<compile_context>
chip_gen: v7x
topology: tpu7x:2x2x1
jax: 0.10.0
libtpu: 0.0.40
codegen_flags: <defaults>
</compile_context>

<pallas_src>
import jax
import jax.numpy as jnp
from jax.experimental import pallas as pl
from jax.experimental.pallas import tpu as pltpu

_DOT_DTYPE = jnp.bfloat16   # MXU operand dtype (f32 accumulation everywhere)


def _round_up(n, m):
    return ((n + m - 1) // m) * m


def _pad2(a, rows=None, cols=None):
    r = a.shape[0] if rows is None else rows
    c = a.shape[1] if cols is None else cols
    return jnp.pad(a, ((0, r - a.shape[0]), (0, c - a.shape[1])))


# ---------------------------------------------------------------------------
# Kernel 1: fused encoder (conv1+ReLU, conv2+ReLU, fc⊕LSTM-input-projection)
# ---------------------------------------------------------------------------

def _encoder_proj_kernel(x_ref, w1_ref, b1_ref, w2_ref, b2_ref, wfi_ref, bfi_ref,
                         o_ref):
    """One tile of windows: x (WT, C*L) -> per-window LSTM gate inputs (WT, 8*Hh)."""
    x = x_ref[...]                                                        # bf16 (WT, C*L)
    y = jnp.maximum(
        jnp.dot(x, w1_ref[...], preferred_element_type=jnp.float32) + b1_ref[...],
        0.0)                                                              # conv1 + ReLU
    y = jnp.maximum(
        jnp.dot(y.astype(_DOT_DTYPE), w2_ref[...],
                preferred_element_type=jnp.float32) + b2_ref[...],
        0.0)                                                              # conv2 + ReLU
    proj = jnp.dot(y.astype(_DOT_DTYPE), wfi_ref[...],
                   preferred_element_type=jnp.float32) + bfi_ref[...]     # fc ⊕ W_in
    o_ref[...] = proj.astype(o_ref.dtype)                                 # bf16 writeback


def _encoder_lstm_inproj(x2d, w1, b1, w2, b2, wfi, bfi, window_tile=512):
    """x2d: (N, C*L) one row per window (channel-major flatten) -> (N, 8*Hh) bf16."""
    N, D = x2d.shape
    G = wfi.shape[1]
    wt = min(window_tile, pl.cdiv(N, 8) * 8)          # tile, multiple of 8 sublanes
    n_pad = pl.cdiv(N, wt) * wt
    xb = x2d.astype(_DOT_DTYPE)
    if n_pad != N:
        xb = jnp.pad(xb, ((0, n_pad - N), (0, 0)))

    def cspec(a):
        return pl.BlockSpec(a.shape, lambda i: (0, 0))

    args = (xb, w1.astype(_DOT_DTYPE), b1, w2.astype(_DOT_DTYPE), b2,
            wfi.astype(_DOT_DTYPE), bfi)
    out = pl.pallas_call(
        _encoder_proj_kernel,
        out_shape=jax.ShapeDtypeStruct((n_pad, G), jnp.bfloat16),
        grid=(n_pad // wt,),
        in_specs=[pl.BlockSpec((wt, D), lambda i: (i, 0))]
                 + [cspec(a) for a in args[1:]],
        out_specs=pl.BlockSpec((wt, G), lambda i: (i, 0)),
        compiler_params=pltpu.CompilerParams(
            dimension_semantics=("parallel",),          # split window tiles across TCs
            vmem_limit_bytes=32 * 1024 * 1024),         # safe on v5e/v6e/v7x
    )(*args)
    return out[:N]


# ---------------------------------------------------------------------------
# Kernel 2: fused BiLSTM recurrence + attention + decoder (subject-tile grid)
# ---------------------------------------------------------------------------

def _bilstm_attn_dec_kernel(xin_ref, wh_ref, aw1x_ref, aw1l_ref, ab1_ref,
                            aw2_ref, ab2_ref, dw1_ref, db1_ref, dw2_ref, db2_ref,
                            logits_ref, hs_ref):
    """xin (T, SB, 8*Hh): pre-selected gate inputs (fwd cols = time s, bwd cols =
    time T-1-s, bias already folded).  Gate column layout is
    [i_f,i_b,f_f,f_b,o_f,o_b,g_f,g_b] so one sigmoid covers i,f,o and one tanh covers g.
    Output: logits (SB, 2)."""
    T, SB, G = xin_ref.shape
    Hh = G // 8
    H = 2 * Hh

    wh = wh_ref[...]                                              # (2Hh, 8Hh), bf16

    def step(s, carry):
        h, c = carry                                              # (SB, 2Hh) f32 [fwd|bwd]
        g = xin_ref[s] + jnp.dot(h.astype(_DOT_DTYPE), wh,
                                 preferred_element_type=jnp.float32)     # (SB, 8Hh)
        sg = jax.nn.sigmoid(g[:, :3 * H])                         # i, f, o gates (6Hh lanes)
        gg = jnp.tanh(g[:, 3 * H:])                               # g gate (2Hh lanes)
        i_g = sg[:, 0 * H:1 * H]
        f_g = sg[:, 1 * H:2 * H]
        o_g = sg[:, 2 * H:3 * H]
        c_new = f_g * c + i_g * gg
        h_new = o_g * jnp.tanh(c_new)
        hs_ref[s] = h_new                                         # one store per step
        return h_new, c_new

    zeros = jnp.zeros((SB, H), jnp.float32)
    jax.lax.fori_loop(0, T, step, (zeros, zeros), unroll=T <= 32)

    # ---- epilogue: assemble outputs (time-flip of the backward half, off the
    #      serial path; T is small and static so the flip is unrolled) ----
    hs = hs_ref[...]                                              # (T, SB, 2Hh)
    outs_f = hs[:, :, :Hh]
    outs_b = jnp.concatenate([hs[T - 1 - t, :, Hh:][None] for t in range(T)], axis=0)
    outs3 = jnp.concatenate([outs_f, outs_b], axis=-1)            # (T, SB, H)
    outs2 = outs3.reshape(T * SB, H)

    # ---- attention over the T windows, batched over the subject tile ----
    A = aw1x_ref.shape[1]
    last = outs3[T - 1]                                           # X[-1] per subject
    last_proj = jnp.dot(last.astype(_DOT_DTYPE), aw1l_ref[...],
                        preferred_element_type=jnp.float32) + ab1_ref[...]   # (SB, A)
    h1 = jnp.dot(outs2.astype(_DOT_DTYPE), aw1x_ref[...],
                 preferred_element_type=jnp.float32).reshape(T, SB, A)
    h1 = jnp.maximum(h1 + last_proj[None], 0.0)                   # (T, SB, A)
    # 1-wide score GEMM replaced by VPU multiply + lane reduction, kept in f32
    scores = jnp.sum(h1 * aw2_ref[...], axis=-1, keepdims=True) + ab2_ref[...]  # (T,SB,1)
    m = jnp.max(scores, axis=0, keepdims=True)                    # softmax over windows
    e = jnp.exp(scores - m)
    w3 = e / jnp.sum(e, axis=0, keepdims=True)
    applied = jnp.sum(outs3 * w3, axis=0)                         # (SB, H) == bmm(w, outs)
    d1 = jnp.maximum(
        jnp.dot(applied.astype(_DOT_DTYPE), dw1_ref[...],
                preferred_element_type=jnp.float32) + db1_ref[...], 0.0)
    logits_ref[...] = (jnp.dot(d1.astype(_DOT_DTYPE), dw2_ref[...],
                               preferred_element_type=jnp.float32) + db2_ref[...])


def _bilstm_attn_dec(xin_tbg, w_h, p, sb):
    """xin_tbg: (T, BP, 8*Hh) bf16 pre-selected gate inputs -> logits (BP, 2)."""
    T, BP, G = xin_tbg.shape
    Hh = G // 8
    H = 2 * Hh

    def cspec(a):
        return pl.BlockSpec(a.shape, lambda i: (0, 0))

    aw1 = p["attn_w1"]
    args = (xin_tbg,
            w_h.astype(_DOT_DTYPE),
            aw1[:H].astype(_DOT_DTYPE),        # multiplies X[i]
            aw1[H:].astype(_DOT_DTYPE),        # multiplies X[-1] (computed once/subject)
            p["attn_b1"],
            p["attn_w2"].T,                    # (1, 128) f32, VPU score path
            p["attn_b2"],
            p["dec_w1"].astype(_DOT_DTYPE), p["dec_b1"],
            p["dec_w2"].astype(_DOT_DTYPE), p["dec_b2"])
    return pl.pallas_call(
        _bilstm_attn_dec_kernel,
        out_shape=jax.ShapeDtypeStruct((BP, 2), jnp.float32),
        grid=(BP // sb,),
        in_specs=[pl.BlockSpec((T, sb, G), lambda i: (0, i, 0))]
                 + [cspec(a) for a in args[1:]],
        out_specs=pl.BlockSpec((sb, 2), lambda i: (i, 0)),
        scratch_shapes=[pltpu.VMEM((T, sb, H), jnp.float32)],   # per-step hidden states
        compiler_params=pltpu.CompilerParams(
            dimension_semantics=("parallel",),   # independent subject tiles -> 2nd TC (v7x)
            vmem_limit_bytes=32 * 1024 * 1024),
    )(*args)


# ---------------------------------------------------------------------------
# Parameter packing (pure XLA, constant-folded under jit)
# ---------------------------------------------------------------------------

def _conv1d_as_dense(w, b, k, c_in, c_out, l_in):
    """Valid Conv1d as a dense block-Toeplitz matmul on position-major flattened rows.
    Row index = l*c_in + c, column index = l_out*c_out + o; w[(j*c_in + c), o]."""
    l_out = l_in - k + 1
    w3 = w.reshape(k, c_in, c_out)
    full = jnp.zeros((l_in * c_in, l_out * c_out), jnp.float32)
    for lo in range(l_out):
        for j in range(k):
            full = full.at[(lo + j) * c_in:(lo + j + 1) * c_in,
                           lo * c_out:(lo + 1) * c_out].set(w3[j])
    b_full = jnp.tile(b, (1, l_out))
    return full, b_full


def _pack_bilstm_weights(p):
    """Interleave fwd/bwd weights per gate into one 128-wide gate axis (gate order
    i, f, o, g so sigmoid gates are contiguous and tanh is last); block-diag Wh."""
    Hh = p["lstm_whf"].shape[0]
    order = (0, 1, 3, 2)                                 # PyTorch i,f,g,o -> packed i,f,o,g

    def interleave(wf, wb):
        blocks = []
        for gate in order:
            blocks.append(wf[:, gate * Hh:(gate + 1) * Hh])
            blocks.append(wb[:, gate * Hh:(gate + 1) * Hh])
        return jnp.concatenate(blocks, axis=-1)

    w_in = interleave(p["lstm_wif"], p["lstm_wib"])                        # (F, 8Hh)
    zero = jnp.zeros((Hh, 4 * Hh), jnp.float32)
    w_h = jnp.concatenate([interleave(p["lstm_whf"], zero),
                           interleave(zero, p["lstm_whb"])], axis=0)       # (2Hh, 8Hh)
    b = interleave(p["lstm_bf"], p["lstm_bb"])                             # (1, 8Hh)
    return w_in, w_h, b


# ---------------------------------------------------------------------------
# Full forward pass (combinedModel.forward)
# ---------------------------------------------------------------------------

def combined_model_forward(sx, p, window_tile=512, subj_tile=64):
    """sx: (B, T, C, L) -> logits (B, 2)."""
    B, T, C, L = sx.shape
    k1, k2 = p["conv1_k"], p["conv2_k"]
    C1, C2 = p["conv1_w"].shape[1], p["conv2_w"].shape[1]
    L1 = L - k1 + 1
    L2 = L1 - k2 + 1
    Hh = p["lstm_whf"].shape[0]
    G = 8 * Hh

    # ---- constant parameter packing (folded under jit) ----
    w1, b1 = _conv1d_as_dense(p["conv1_w"], p["conv1_b"], k1, C, C1, L)
    # Permute conv1 rows to channel-major (c*L + l) so sx.reshape(B*T, C*L) feeds the
    # GEMM directly (no HBM transpose of the big input).
    w1 = w1.reshape(L, C, L1 * C1).transpose(1, 0, 2).reshape(C * L, L1 * C1)
    w2, b2 = _conv1d_as_dense(p["conv2_w"], p["conv2_b"], k2, C1, C2, L1)
    w_in, w_h, b_lstm = _pack_bilstm_weights(p)
    # Fuse enc_fc with the hoisted LSTM input projection (no nonlinearity between).
    w_fc_in = p["enc_fc_w"] @ w_in                                     # (L2*C2, 8Hh)
    b_fc_in = p["enc_fc_b"] @ w_in + b_lstm                            # (1, 8Hh)
    # Zero-pad intermediate conv widths to lane-dense multiples of 128 (ReLU(0)=0).
    P1 = _round_up(L1 * C1, 128)
    P2 = _round_up(L2 * C2, 128)
    w1 = _pad2(w1, cols=P1)
    b1 = _pad2(b1, cols=P1)
    w2 = _pad2(w2, rows=P1, cols=P2)
    b2 = _pad2(b2, cols=P2)
    w_fc_in = _pad2(w_fc_in, rows=P2)

    # ---- stage 1: encoder + fused LSTM input projection (free input reshape) ----
    x2d = sx.reshape(B * T, C * L)                                     # row = b*T + t
    xproj = _encoder_lstm_inproj(x2d, w1, b1, w2, b2, w_fc_in, b_fc_in,
                                 window_tile=window_tile)              # (B*T, 8Hh) bf16

    # ---- tiny wrapper-side reorder: (B,T,G)->(T,B,G), pre-select fwd/bwd inputs,
    #      pad subjects to the tile size (all on the small 128-lane xproj) ----
    xproj = xproj.reshape(B, T, G).transpose(1, 0, 2)                  # (T, B, G)
    fwd_mask = (jnp.arange(G) // Hh) % 2 == 0
    xin = jnp.where(fwd_mask, xproj, xproj[::-1])                      # fwd: t, bwd: T-1-t
    BP0 = pl.cdiv(B, 8) * 8
    sb = min(subj_tile, BP0)
    BP = pl.cdiv(BP0, sb) * sb
    if BP != B:
        xin = jnp.pad(xin, ((0, 0), (0, BP - B), (0, 0)))

    # ---- stage 2: BiLSTM + attention + decoder ----
    logits = _bilstm_attn_dec(xin, w_h, p, sb)                         # (BP, 2)
    return logits[:B]


# ---------------------------------------------------------------------------
# Deterministic parameter construction
# ---------------------------------------------------------------------------

def _xavier_normal(key, fan_in, fan_out, gain):
    std = gain * jnp.sqrt(2.0 / (fan_in + fan_out))
    return std * jax.random.normal(key, (fan_in, fan_out), jnp.float32)


def _scaled_normal(key, shape, scale=0.05):
    return scale * jax.random.normal(key, shape, jnp.float32)


def init_params(key, C, L, feature_size, hidden_dim, gain=0.1):
    Hh = hidden_dim // 2            # per-direction hidden (bidirectional concat = hidden_dim)
    C1, C2, k1, k2 = 8, 16, 4, 3
    L1 = L - k1 + 1
    L2 = L1 - k2 + 1
    ks = jax.random.split(key, 16)
    p = {
        # encoder (1D CNN); conv weights stored tap-major: row index j*C_in + c
        "conv1_k": k1,
        "conv1_w": _scaled_normal(ks[0], (k1 * C, C1)),
        "conv1_b": jnp.zeros((1, C1), jnp.float32),
        "conv2_k": k2,
        "conv2_w": _scaled_normal(ks[1], (k2 * C1, C2)),
        "conv2_b": jnp.zeros((1, C2), jnp.float32),
        # final encoder Linear; rows indexed position-major (l*C2 + c)
        "enc_fc_w": _scaled_normal(ks[2], (L2 * C2, feature_size)),
        "enc_fc_b": jnp.zeros((1, feature_size), jnp.float32),
        # bidirectional LSTM (gate order i,f,g,o; bias = b_ih + b_hh folded)
        "lstm_wif": _scaled_normal(ks[3], (feature_size, 4 * Hh)),
        "lstm_whf": _scaled_normal(ks[4], (Hh, 4 * Hh)),
        "lstm_bf": jnp.zeros((1, 4 * Hh), jnp.float32),
        "lstm_wib": _scaled_normal(ks[5], (feature_size, 4 * Hh)),
        "lstm_whb": _scaled_normal(ks[6], (Hh, 4 * Hh)),
        "lstm_bb": jnp.zeros((1, 4 * Hh), jnp.float32),
        # attn: Linear(2*hidden_dim, 128) + ReLU + Linear(128, 1)   (xavier, gain=0.1)
        "attn_w1": _xavier_normal(ks[7], 2 * hidden_dim, 128, gain),
        "attn_b1": jnp.zeros((1, 128), jnp.float32),
        "attn_w2": _xavier_normal(ks[8], 128, 1, gain),
        "attn_b2": jnp.zeros((1, 1), jnp.float32),
        # decoder: Linear(hidden_dim, hidden_dim) + ReLU + Linear(hidden_dim, 2)
        "dec_w1": _xavier_normal(ks[9], hidden_dim, hidden_dim, gain),
        "dec_b1": jnp.zeros((1, hidden_dim), jnp.float32),
        "dec_w2": _xavier_normal(ks[10], hidden_dim, 2, gain),
        "dec_b2": jnp.zeros((1, 2), jnp.float32),
        # NOTE: classifier1 exists in __init__ but is unused in forward() -> omitted.
    }
    return p


# ---------------------------------------------------------------------------

if __name__ == "__main__":
    B, T, C, L = 2, 8, 4, 16            # subjects, windows, ICA channels, window length
    feature_size, hidden_dim = 32, 32   # encoder.feature_size, lstm.hidden_dim

    key = jax.random.PRNGKey(0)
    pkey, xkey = jax.random.split(key)
    params = init_params(pkey, C, L, feature_size, hidden_dim)
    sx = jax.random.normal(xkey, (B, T, C, L), jnp.float32)

    logits = jax.jit(lambda x: combined_model_forward(x, params))(sx)
    jax.block_until_ready(logits)
    assert logits.shape == (B, 2) and logits.dtype == jnp.float32
    assert bool(jnp.all(jnp.isfinite(logits)))
    print("KERNEL_OK")
</pallas_src>

<mosaic_0001>
module attributes {stable_mosaic.version = 11 : i64} {
  func.func @_encoder_proj_kernel(%arg0: i32, %arg1: memref<16x64xbf16, #tpu.memory_space<vmem>>, %arg2: memref<64x128xbf16, #tpu.memory_space<vmem>>, %arg3: memref<1x128xf32, #tpu.memory_space<vmem>>, %arg4: memref<128x256xbf16, #tpu.memory_space<vmem>>, %arg5: memref<1x256xf32, #tpu.memory_space<vmem>>, %arg6: memref<256x128xbf16, #tpu.memory_space<vmem>>, %arg7: memref<1x128xf32, #tpu.memory_space<vmem>>, %arg8: memref<16x128xbf16, #tpu.memory_space<vmem>>) attributes {dimension_semantics = [#tpu.dimension_semantics<parallel>], iteration_bounds = array<i64: 1>, scalar_prefetch = 0 : i64, scratch_operands = 0 : i64, tpu.core_type = #tpu.core_type<tc>, window_params = [{transform_indices = @transform_0, window_bounds = array<i64: 16, 64>}, {pipeline_mode = #tpu.pipeline_mode<synchronous>, transform_indices = @transform_1, window_bounds = array<i64: 64, 128>}, {pipeline_mode = #tpu.pipeline_mode<synchronous>, transform_indices = @transform_2, window_bounds = array<i64: 1, 128>}, {pipeline_mode = #tpu.pipeline_mode<synchronous>, transform_indices = @transform_3, window_bounds = array<i64: 128, 256>}, {pipeline_mode = #tpu.pipeline_mode<synchronous>, transform_indices = @transform_4, window_bounds = array<i64: 1, 256>}, {pipeline_mode = #tpu.pipeline_mode<synchronous>, transform_indices = @transform_5, window_bounds = array<i64: 256, 128>}, {pipeline_mode = #tpu.pipeline_mode<synchronous>, transform_indices = @transform_6, window_bounds = array<i64: 1, 128>}, {transform_indices = @transform_7, window_bounds = array<i64: 16, 128>}]} {
    %c0 = arith.constant 0 : index
    %c0_0 = arith.constant 0 : index
    %0 = vector.load %arg1[%c0, %c0_0] : memref<16x64xbf16, #tpu.memory_space<vmem>>, vector<16x64xbf16>
    %c0_1 = arith.constant 0 : index
    %c0_2 = arith.constant 0 : index
    %1 = vector.load %arg2[%c0_1, %c0_2] : memref<64x128xbf16, #tpu.memory_space<vmem>>, vector<64x128xbf16>
    %cst = arith.constant dense<0.000000e+00> : vector<16x128xf32>
    %2 = tpu.matmul %0, %1, %cst {dimension_numbers = #tpu.dot_dimension_numbers<[1], [0], [0], [1], [0, 0, 1, 1], [], []>} : vector<16x64xbf16>, vector<64x128xbf16>, vector<16x128xf32> -> vector<16x128xf32>
    %c0_3 = arith.constant 0 : index
    %c0_4 = arith.constant 0 : index
    %3 = vector.load %arg3[%c0_3, %c0_4] : memref<1x128xf32, #tpu.memory_space<vmem>>, vector<1x128xf32>
    %4 = vector.broadcast %3 : vector<1x128xf32> to vector<16x128xf32>
    %5 = arith.addf %2, %4 : vector<16x128xf32>
    %cst_5 = arith.constant 0.000000e+00 : f32
    %6 = vector.broadcast %cst_5 : f32 to vector<16x128xf32>
    %7 = arith.maximumf %5, %6 : vector<16x128xf32>
    %8 = arith.truncf %7 : vector<16x128xf32> to vector<16x128xbf16>
    %c0_6 = arith.constant 0 : index
    %c0_7 = arith.constant 0 : index
    %9 = vector.load %arg4[%c0_6, %c0_7] : memref<128x256xbf16, #tpu.memory_space<vmem>>, vector<128x256xbf16>
    %cst_8 = arith.constant dense<0.000000e+00> : vector<16x256xf32>
    %10 = tpu.matmul %8, %9, %cst_8 {dimension_numbers = #tpu.dot_dimension_numbers<[1], [0], [0], [1], [0, 0, 1, 1], [], []>} : vector<16x128xbf16>, vector<128x256xbf16>, vector<16x256xf32> -> vector<16x256xf32>
    %c0_9 = arith.constant 0 : index
    %c0_10 = arith.constant 0 : index
    %11 = vector.load %arg5[%c0_9, %c0_10] : memref<1x256xf32, #tpu.memory_space<vmem>>, vector<1x256xf32>
    %12 = vector.broadcast %11 : vector<1x256xf32> to vector<16x256xf32>
    %13 = arith.addf %10, %12 : vector<16x256xf32>
    %cst_11 = arith.constant 0.000000e+00 : f32
    %14 = vector.broadcast %cst_11 : f32 to vector<16x256xf32>
    %15 = arith.maximumf %13, %14 : vector<16x256xf32>
    %16 = arith.truncf %15 : vector<16x256xf32> to vector<16x256xbf16>
    %c0_12 = arith.constant 0 : index
    %c0_13 = arith.constant 0 : index
    %17 = vector.load %arg6[%c0_12, %c0_13] : memref<256x128xbf16, #tpu.memory_space<vmem>>, vector<256x128xbf16>
    %cst_14 = arith.constant dense<0.000000e+00> : vector<16x128xf32>
    %18 = tpu.matmul %16, %17, %cst_14 {dimension_numbers = #tpu.dot_dimension_numbers<[1], [0], [0], [1], [0, 0, 1, 1], [], []>} : vector<16x256xbf16>, vector<256x128xbf16>, vector<16x128xf32> -> vector<16x128xf32>
    %c0_15 = arith.constant 0 : index
    %c0_16 = arith.constant 0 : index
    %19 = vector.load %arg7[%c0_15, %c0_16] : memref<1x128xf32, #tpu.memory_space<vmem>>, vector<1x128xf32>
    %20 = vector.broadcast %19 : vector<1x128xf32> to vector<16x128xf32>
    %21 = arith.addf %18, %20 : vector<16x128xf32>
    %22 = arith.truncf %21 : vector<16x128xf32> to vector<16x128xbf16>
    %c0_17 = arith.constant 0 : index
    %c0_18 = arith.constant 0 : index
    %23 = vector.load %arg8[%c0_17, %c0_18] : memref<16x128xbf16, #tpu.memory_space<vmem>>, vector<16x128xbf16>
    tpu.vector_store %arg8[%c0_17, %c0_18], %22 {strides = array<i32>} : memref<16x128xbf16, #tpu.memory_space<vmem>>, vector<16x128xbf16>,
    return
  }
  func.func @transform_0(%arg0: i32) -> (i32, i32) {
    %c0_i32 = arith.constant 0 : i32
    %c0_i32_0 = arith.constant 0 : i32
    return %arg0, %c0_i32 : i32, i32
  }
  func.func @transform_1(%arg0: i32) -> (i32, i32) {
    %c0_i32 = arith.constant 0 : i32
    %c0_i32_0 = arith.constant 0 : i32
    %c0_i32_1 = arith.constant 0 : i32
    return %c0_i32, %c0_i32_0 : i32, i32
  }
  func.func @transform_2(%arg0: i32) -> (i32, i32) {
    %c0_i32 = arith.constant 0 : i32
    %c0_i32_0 = arith.constant 0 : i32
    %c0_i32_1 = arith.constant 0 : i32
    return %c0_i32, %c0_i32_0 : i32, i32
  }
  func.func @transform_3(%arg0: i32) -> (i32, i32) {
    %c0_i32 = arith.constant 0 : i32
    %c0_i32_0 = arith.constant 0 : i32
    %c0_i32_1 = arith.constant 0 : i32
    return %c0_i32, %c0_i32_0 : i32, i32
  }
  func.func @transform_4(%arg0: i32) -> (i32, i32) {
    %c0_i32 = arith.constant 0 : i32
    %c0_i32_0 = arith.constant 0 : i32
    %c0_i32_1 = arith.constant 0 : i32
    return %c0_i32, %c0_i32_0 : i32, i32
  }
  func.func @transform_5(%arg0: i32) -> (i32, i32) {
    %c0_i32 = arith.constant 0 : i32
    %c0_i32_0 = arith.constant 0 : i32
    %c0_i32_1 = arith.constant 0 : i32
    return %c0_i32, %c0_i32_0 : i32, i32
  }
  func.func @transform_6(%arg0: i32) -> (i32, i32) {
    %c0_i32 = arith.constant 0 : i32
    %c0_i32_0 = arith.constant 0 : i32
    %c0_i32_1 = arith.constant 0 : i32
    return %c0_i32, %c0_i32_0 : i32, i32
  }
  func.func @transform_7(%arg0: i32) -> (i32, i32) {
    %c0_i32 = arith.constant 0 : i32
    %c0_i32_0 = arith.constant 0 : i32
    return %arg0, %c0_i32 : i32, i32
  }
}

module attributes {stable_mosaic.version = 11 : i64} {
  func.func @_bilstm_attn_dec_kernel(%arg0: i32, %arg1: memref<8x8x128xbf16, #tpu.memory_space<vmem>>, %arg2: memref<32x128xbf16, #tpu.memory_space<vmem>>, %arg3: memref<32x128xbf16, #tpu.memory_space<vmem>>, %arg4: memref<32x128xbf16, #tpu.memory_space<vmem>>, %arg5: memref<1x128xf32, #tpu.memory_space<vmem>>, %arg6: memref<1x128xf32, #tpu.memory_space<vmem>>, %arg7: memref<1x1xf32, #tpu.memory_space<vmem>>, %arg8: memref<32x32xbf16, #tpu.memory_space<vmem>>, %arg9: memref<1x32xf32, #tpu.memory_space<vmem>>, %arg10: memref<32x2xbf16, #tpu.memory_space<vmem>>, %arg11: memref<1x2xf32, #tpu.memory_space<vmem>>, %arg12: memref<8x2xf32, #tpu.memory_space<vmem>>, %arg13: memref<8x8x32xf32, #tpu.memory_space<vmem>>) attributes {dimension_semantics = [#tpu.dimension_semantics<parallel>], iteration_bounds = array<i64: 1>, scalar_prefetch = 0 : i64, scratch_operands = 1 : i64, tpu.core_type = #tpu.core_type<tc>, window_params = [{transform_indices = @transform_0, window_bounds = array<i64: 8, 8, 128>}, {pipeline_mode = #tpu.pipeline_mode<synchronous>, transform_indices = @transform_1, window_bounds = array<i64: 32, 128>}, {pipeline_mode = #tpu.pipeline_mode<synchronous>, transform_indices = @transform_2, window_bounds = array<i64: 32, 128>}, {pipeline_mode = #tpu.pipeline_mode<synchronous>, transform_indices = @transform_3, window_bounds = array<i64: 32, 128>}, {pipeline_mode = #tpu.pipeline_mode<synchronous>, transform_indices = @transform_4, window_bounds = array<i64: 1, 128>}, {pipeline_mode = #tpu.pipeline_mode<synchronous>, transform_indices = @transform_5, window_bounds = array<i64: 1, 128>}, {pipeline_mode = #tpu.pipeline_mode<synchronous>, transform_indices = @transform_6, window_bounds = array<i64: 1, 1>}, {pipeline_mode = #tpu.pipeline_mode<synchronous>, transform_indices = @transform_7, window_bounds = array<i64: 32, 32>}, {pipeline_mode = #tpu.pipeline_mode<synchronous>, transform_indices = @transform_8, window_bounds = array<i64: 1, 32>}, {pipeline_mode = #tpu.pipeline_mode<synchronous>, transform_indices = @transform_9, window_bounds = array<i64: 32, 2>}, {pipeline_mode = #tpu.pipeline_mode<synchronous>, transform_indices = @transform_10, window_bounds = array<i64: 1, 2>}, {transform_indices = @transform_11, window_bounds = array<i64: 8, 2>}]} {
    %c0 = arith.constant 0 : index
    %c0_0 = arith.constant 0 : index
    %0 = vector.load %arg2[%c0, %c0_0] : memref<32x128xbf16, #tpu.memory_space<vmem>>, vector<32x128xbf16>
    %cst = arith.constant 0.000000e+00 : f32
    %1 = vector.broadcast %cst : f32 to vector<8x32xf32>
    %c0_i32 = arith.constant 0 : i32
    %2 = arith.index_cast %c0_i32 : i32 to index
    %c0_1 = arith.constant 0 : index
    %c0_2 = arith.constant 0 : index
    %3 = vector.load %arg1[%2, %c0_1, %c0_2] : memref<8x8x128xbf16, #tpu.memory_space<vmem>>, vector<1x8x128xbf16>
    %4 = vector.shape_cast %3 : vector<1x8x128xbf16> to vector<8x128xbf16>
    %5 = arith.truncf %1 : vector<8x32xf32> to vector<8x32xbf16>
    %cst_3 = arith.constant dense<0.000000e+00> : vector<8x128xf32>
    %6 = tpu.matmul %5, %0, %cst_3 {dimension_numbers = #tpu.dot_dimension_numbers<[1], [0], [0], [1], [0, 0, 1, 1], [], []>} : vector<8x32xbf16>, vector<32x128xbf16>, vector<8x128xf32> -> vector<8x128xf32>
    %7 = arith.extf %4 : vector<8x128xbf16> to vector<8x128xf32>
    %8 = arith.addf %7, %6 : vector<8x128xf32>
    %9 = vector.extract_strided_slice %8 {offsets = [0, 0], sizes = [8, 96], strides = [1, 1]} : vector<8x128xf32> to vector<8x96xf32>
    %10 = arith.negf %9 : vector<8x96xf32>
    %11 = math.exp %10 : vector<8x96xf32>
    %cst_4 = arith.constant 1.000000e+00 : f32
    %12 = vector.broadcast %cst_4 : f32 to vector<8x96xf32>
    %13 = arith.addf %12, %11 : vector<8x96xf32>
    %14 = arith.divf %12, %13 : vector<8x96xf32>
    %15 = vector.extract_strided_slice %8 {offsets = [0, 96], sizes = [8, 32], strides = [1, 1]} : vector<8x128xf32> to vector<8x32xf32>
    %16 = math.tanh %15 : vector<8x32xf32>
    %17 = vector.extract_strided_slice %14 {offsets = [0, 0], sizes = [8, 32], strides = [1, 1]} : vector<8x96xf32> to vector<8x32xf32>
    %18 = vector.extract_strided_slice %14 {offsets = [0, 32], sizes = [8, 32], strides = [1, 1]} : vector<8x96xf32> to vector<8x32xf32>
    %19 = vector.extract_strided_slice %14 {offsets = [0, 64], sizes = [8, 32], strides = [1, 1]} : vector<8x96xf32> to vector<8x32xf32>
    %20 = arith.mulf %18, %1 : vector<8x32xf32>
    %21 = arith.mulf %17, %16 : vector<8x32xf32>
    %22 = arith.addf %20, %21 : vector<8x32xf32>
    %23 = math.tanh %22 : vector<8x32xf32>
    %24 = arith.mulf %19, %23 : vector<8x32xf32>
    %25 = arith.index_cast %c0_i32 : i32 to index
    %c0_5 = arith.constant 0 : index
    %c0_6 = arith.constant 0 : index
    %26 = vector.load %arg13[%25, %c0_5, %c0_6] : memref<8x8x32xf32, #tpu.memory_space<vmem>>, vector<1x8x32xf32>
    %27 = vector.shape_cast %26 : vector<1x8x32xf32> to vector<8x32xf32>
    %28 = vector.shape_cast %24 : vector<8x32xf32> to vector<1x8x32xf32>
    tpu.vector_store %arg13[%25, %c0_5, %c0_6], %28 {strides = array<i32>} : memref<8x8x32xf32, #tpu.memory_space<vmem>>, vector<1x8x32xf32>,
    %c1_i32 = arith.constant 1 : i32
    %29 = arith.index_cast %c1_i32 : i32 to index
    %c0_7 = arith.constant 0 : index
    %c0_8 = arith.constant 0 : index
    %30 = vector.load %arg1[%29, %c0_7, %c0_8] : memref<8x8x128xbf16, #tpu.memory_space<vmem>>, vector<1x8x128xbf16>
    %31 = vector.shape_cast %30 : vector<1x8x128xbf16> to vector<8x128xbf16>
    %32 = arith.truncf %24 : vector<8x32xf32> to vector<8x32xbf16>
    %cst_9 = arith.constant dense<0.000000e+00> : vector<8x128xf32>
    %33 = tpu.matmul %32, %0, %cst_9 {dimension_numbers = #tpu.dot_dimension_numbers<[1], [0], [0], [1], [0, 0, 1, 1], [], []>} : vector<8x32xbf16>, vector<32x128xbf16>, vector<8x128xf32> -> vector<8x128xf32>
    %34 = arith.extf %31 : vector<8x128xbf16> to vector<8x128xf32>
    %35 = arith.addf %34, %33 : vector<8x128xf32>
    %36 = vector.extract_strided_slice %35 {offsets = [0, 0], sizes = [8, 96], strides = [1, 1]} : vector<8x128xf32> to vector<8x96xf32>
    %37 = arith.negf %36 : vector<8x96xf32>
    %38 = math.exp %37 : vector<8x96xf32>
    %cst_10 = arith.constant 1.000000e+00 : f32
    %39 = vector.broadcast %cst_10 : f32 to vector<8x96xf32>
    %40 = arith.addf %39, %38 : vector<8x96xf32>
    %41 = arith.divf %39, %40 : vector<8x96xf32>
    %42 = vector.extract_strided_slice %35 {offsets = [0, 96], sizes = [8, 32], strides = [1, 1]} : vector<8x128xf32> to vector<8x32xf32>
    %43 = math.tanh %42 : vector<8x32xf32>
    %44 = vector.extract_strided_slice %41 {offsets = [0, 0], sizes = [8, 32], strides = [1, 1]} : vector<8x96xf32> to vector<8x32xf32>
    %45 = vector.extract_strided_slice %41 {offsets = [0, 32], sizes = [8, 32], strides = [1, 1]} : vector<8x96xf32> to vector<8x32xf32>
    %46 = vector.extract_strided_slice %41 {offsets = [0, 64], sizes = [8, 32], strides = [1, 1]} : vector<8x96xf32> to vector<8x32xf32>
    %47 = arith.mulf %45, %22 : vector<8x32xf32>
    %48 = arith.mulf %44, %43 : vector<8x32xf32>
    %49 = arith.addf %47, %48 : vector<8x32xf32>
    %50 = math.tanh %49 : vector<8x32xf32>
    %51 = arith.mulf %46, %50 : vector<8x32xf32>
    %52 = arith.index_cast %c1_i32 : i32 to index
    %c0_11 = arith.constant 0 : index
    %c0_12 = arith.constant 0 : index
    %53 = vector.load %arg13[%52, %c0_11, %c0_12] : memref<8x8x32xf32, #tpu.memory_space<vmem>>, vector<1x8x32xf32>
    %54 = vector.shape_cast %53 : vector<1x8x32xf32> to vector<8x32xf32>
    %55 = vector.shape_cast %51 : vector<8x32xf32> to vector<1x8x32xf32>
    tpu.vector_store %arg13[%52, %c0_11, %c0_12], %55 {strides = array<i32>} : memref<8x8x32xf32, #tpu.memory_space<vmem>>, vector<1x8x32xf32>,
    %c2_i32 = arith.constant 2 : i32
    %56 = arith.index_cast %c2_i32 : i32 to index
    %c0_13 = arith.constant 0 : index
    %c0_14 = arith.constant 0 : index
    %57 = vector.load %arg1[%56, %c0_13, %c0_14] : memref<8x8x128xbf16, #tpu.memory_space<vmem>>, vector<1x8x128xbf16>
    %58 = vector.shape_cast %57 : vector<1x8x128xbf16> to vector<8x128xbf16>
    %59 = arith.truncf %51 : vector<8x32xf32> to vector<8x32xbf16>
    %cst_15 = arith.constant dense<0.000000e+00> : vector<8x128xf32>
    %60 = tpu.matmul %59, %0, %cst_15 {dimension_numbers = #tpu.dot_dimension_numbers<[1], [0], [0], [1], [0, 0, 1, 1], [], []>} : vector<8x32xbf16>, vector<32x128xbf16>, vector<8x128xf32> -> vector<8x128xf32>
    %61 = arith.extf %58 : vector<8x128xbf16> to vector<8x128xf32>
    %62 = arith.addf %61, %60 : vector<8x128xf32>
    %63 = vector.extract_strided_slice %62 {offsets = [0, 0], sizes = [8, 96], strides = [1, 1]} : vector<8x128xf32> to vector<8x96xf32>
    %64 = arith.negf %63 : vector<8x96xf32>
    %65 = math.exp %64 : vector<8x96xf32>
    %cst_16 = arith.constant 1.000000e+00 : f32
    %66 = vector.broadcast %cst_16 : f32 to vector<8x96xf32>
    %67 = arith.addf %66, %65 : vector<8x96xf32>
    %68 = arith.divf %66, %67 : vector<8x96xf32>
    %69 = vector.extract_strided_slice %62 {offsets = [0, 96], sizes = [8, 32], strides = [1, 1]} : vector<8x128xf32> to vector<8x32xf32>
    %70 = math.tanh %69 : vector<8x32xf32>
    %71 = vector.extract_strided_slice %68 {offsets = [0, 0], sizes = [8, 32], strides = [1, 1]} : vector<8x96xf32> to vector<8x32xf32>
    %72 = vector.extract_strided_slice %68 {offsets = [0, 32], sizes = [8, 32], strides = [1, 1]} : vector<8x96xf32> to vector<8x32xf32>
    %73 = vector.extract_strided_slice %68 {offsets = [0, 64], sizes = [8, 32], strides = [1, 1]} : vector<8x96xf32> to vector<8x32xf32>
    %74 = arith.mulf %72, %49 : vector<8x32xf32>
    %75 = arith.mulf %71, %70 : vector<8x32xf32>
    %76 = arith.addf %74, %75 : vector<8x32xf32>
    %77 = math.tanh %76 : vector<8x32xf32>
    %78 = arith.mulf %73, %77 : vector<8x32xf32>
    %79 = arith.index_cast %c2_i32 : i32 to index
    %c0_17 = arith.constant 0 : index
    %c0_18 = arith.constant 0 : index
    %80 = vector.load %arg13[%79, %c0_17, %c0_18] : memref<8x8x32xf32, #tpu.memory_space<vmem>>, vector<1x8x32xf32>
    %81 = vector.shape_cast %80 : vector<1x8x32xf32> to vector<8x32xf32>
    %82 = vector.shape_cast %78 : vector<8x32xf32> to vector<1x8x32xf32>
    tpu.vector_store %arg13[%79, %c0_17, %c0_18], %82 {strides = array<i32>} : memref<8x8x32xf32, #tpu.memory_space<vmem>>, vector<1x8x32xf32>,
    %c3_i32 = arith.constant 3 : i32
    %83 = arith.index_cast %c3_i32 : i32 to index
    %c0_19 = arith.constant 0 : index
    %c0_20 = arith.constant 0 : index
    %84 = vector.load %arg1[%83, %c0_19, %c0_20] : memref<8x8x128xbf16, #tpu.memory_space<vmem>>, vector<1x8x128xbf16>
    %85 = vector.shape_cast %84 : vector<1x8x128xbf16> to vector<8x128xbf16>
    %86 = arith.truncf %78 : vector<8x32xf32> to vector<8x32xbf16>
    %cst_21 = arith.constant dense<0.000000e+00> : vector<8x128xf32>
    %87 = tpu.matmul %86, %0, %cst_21 {dimension_numbers = #tpu.dot_dimension_numbers<[1], [0], [0], [1], [0, 0, 1, 1], [], []>} : vector<8x32xbf16>, vector<32x128xbf16>, vector<8x128xf32> -> vector<8x128xf32>
    %88 = arith.extf %85 : vector<8x128xbf16> to vector<8x128xf32>
    %89 = arith.addf %88, %87 : vector<8x128xf32>
    %90 = vector.extract_strided_slice %89 {offsets = [0, 0], sizes = [8, 96], strides = [1, 1]} : vector<8x128xf32> to vector<8x96xf32>
    %91 = arith.negf %90 : vector<8x96xf32>
    %92 = math.exp %91 : vector<8x96xf32>
    %cst_22 = arith.constant 1.000000e+00 : f32
    %93 = vector.broadcast %cst_22 : f32 to vector<8x96xf32>
    %94 = arith.addf %93, %92 : vector<8x96xf32>
    %95 = arith.divf %93, %94 : vector<8x96xf32>
    %96 = vector.extract_strided_slice %89 {offsets = [0, 96], sizes = [8, 32], strides = [1, 1]} : vector<8x128xf32> to vector<8x32xf32>
    %97 = math.tanh %96 : vector<8x32xf32>
    %98 = vector.extract_strided_slice %95 {offsets = [0, 0], sizes = [8, 32], strides = [1, 1]} : vector<8x96xf32> to vector<8x32xf32>
    %99 = vector.extract_strided_slice %95 {offsets = [0, 32], sizes = [8, 32], strides = [1, 1]} : vector<8x96xf32> to vector<8x32xf32>
    %100 = vector.extract_strided_slice %95 {offsets = [0, 64], sizes = [8, 32], strides = [1, 1]} : vector<8x96xf32> to vector<8x32xf32>
    %101 = arith.mulf %99, %76 : vector<8x32xf32>
    %102 = arith.mulf %98, %97 : vector<8x32xf32>
    %103 = arith.addf %101, %102 : vector<8x32xf32>
    %104 = math.tanh %103 : vector<8x32xf32>
    %105 = arith.mulf %100, %104 : vector<8x32xf32>
    %106 = arith.index_cast %c3_i32 : i32 to index
    %c0_23 = arith.constant 0 : index
    %c0_24 = arith.constant 0 : index
    %107 = vector.load %arg13[%106, %c0_23, %c0_24] : memref<8x8x32xf32, #tpu.memory_space<vmem>>, vector<1x8x32xf32>
    %108 = vector.shape_cast %107 : vector<1x8x32xf32> to vector<8x32xf32>
    %109 = vector.shape_cast %105 : vector<8x32xf32> to vector<1x8x32xf32>
    tpu.vector_store %arg13[%106, %c0_23, %c0_24], %109 {strides = array<i32>} : memref<8x8x32xf32, #tpu.memory_space<vmem>>, vector<1x8x32xf32>,
    %c4_i32 = arith.constant 4 : i32
    %110 = arith.index_cast %c4_i32 : i32 to index
    %c0_25 = arith.constant 0 : index
    %c0_26 = arith.constant 0 : index
    %111 = vector.load %arg1[%110, %c0_25, %c0_26] : memref<8x8x128xbf16, #tpu.memory_space<vmem>>, vector<1x8x128xbf16>
    %112 = vector.shape_cast %111 : vector<1x8x128xbf16> to vector<8x128xbf16>
    %113 = arith.truncf %105 : vector<8x32xf32> to vector<8x32xbf16>
    %cst_27 = arith.constant dense<0.000000e+00> : vector<8x128xf32>
    %114 = tpu.matmul %113, %0, %cst_27 {dimension_numbers = #tpu.dot_dimension_numbers<[1], [0], [0], [1], [0, 0, 1, 1], [], []>} : vector<8x32xbf16>, vector<32x128xbf16>, vector<8x128xf32> -> vector<8x128xf32>
    %115 = arith.extf %112 : vector<8x128xbf16> to vector<8x128xf32>
    %116 = arith.addf %115, %114 : vector<8x128xf32>
    %117 = vector.extract_strided_slice %116 {offsets = [0, 0], sizes = [8, 96], strides = [1, 1]} : vector<8x128xf32> to vector<8x96xf32>
    %118 = arith.negf %117 : vector<8x96xf32>
    %119 = math.exp %118 : vector<8x96xf32>
    %cst_28 = arith.constant 1.000000e+00 : f32
    %120 = vector.broadcast %cst_28 : f32 to vector<8x96xf32>
    %121 = arith.addf %120, %119 : vector<8x96xf32>
    %122 = arith.divf %120, %121 : vector<8x96xf32>
    %123 = vector.extract_strided_slice %116 {offsets = [0, 96], sizes = [8, 32], strides = [1, 1]} : vector<8x128xf32> to vector<8x32xf32>
    %124 = math.tanh %123 : vector<8x32xf32>
    %125 = vector.extract_strided_slice %122 {offsets = [0, 0], sizes = [8, 32], strides = [1, 1]} : vector<8x96xf32> to vector<8x32xf32>
    %126 = vector.extract_strided_slice %122 {offsets = [0, 32], sizes = [8, 32], strides = [1, 1]} : vector<8x96xf32> to vector<8x32xf32>
    %127 = vector.extract_strided_slice %122 {offsets = [0, 64], sizes = [8, 32], strides = [1, 1]} : vector<8x96xf32> to vector<8x32xf32>
    %128 = arith.mulf %126, %103 : vector<8x32xf32>
    %129 = arith.mulf %125, %124 : vector<8x32xf32>
    %130 = arith.addf %128, %129 : vector<8x32xf32>
    %131 = math.tanh %130 : vector<8x32xf32>
    %132 = arith.mulf %127, %131 : vector<8x32xf32>
    %133 = arith.index_cast %c4_i32 : i32 to index
    %c0_29 = arith.constant 0 : index
    %c0_30 = arith.constant 0 : index
    %134 = vector.load %arg13[%133, %c0_29, %c0_30] : memref<8x8x32xf32, #tpu.memory_space<vmem>>, vector<1x8x32xf32>
    %135 = vector.shape_cast %134 : vector<1x8x32xf32> to vector<8x32xf32>
    %136 = vector.shape_cast %132 : vector<8x32xf32> to vector<1x8x32xf32>
    tpu.vector_store %arg13[%133, %c0_29, %c0_30], %136 {strides = array<i32>} : memref<8x8x32xf32, #tpu.memory_space<vmem>>, vector<1x8x32xf32>,
    %c5_i32 = arith.constant 5 : i32
    %137 = arith.index_cast %c5_i32 : i32 to index
    %c0_31 = arith.constant 0 : index
    %c0_32 = arith.constant 0 : index
    %138 = vector.load %arg1[%137, %c0_31, %c0_32] : memref<8x8x128xbf16, #tpu.memory_space<vmem>>, vector<1x8x128xbf16>
    %139 = vector.shape_cast %138 : vector<1x8x128xbf16> to vector<8x128xbf16>
    %140 = arith.truncf %132 : vector<8x32xf32> to vector<8x32xbf16>
    %cst_33 = arith.constant dense<0.000000e+00> : vector<8x128xf32>
    %141 = tpu.matmul %140, %0, %cst_33 {dimension_numbers = #tpu.dot_dimension_numbers<[1], [0], [0], [1], [0, 0, 1, 1], [], []>} : vector<8x32xbf16>, vector<32x128xbf16>, vector<8x128xf32> -> vector<8x128xf32>
    %142 = arith.extf %139 : vector<8x128xbf16> to vector<8x128xf32>
    %143 = arith.addf %142, %141 : vector<8x128xf32>
    %144 = vector.extract_strided_slice %143 {offsets = [0, 0], sizes = [8, 96], strides = [1, 1]} : vector<8x128xf32> to vector<8x96xf32>
    %145 = arith.negf %144 : vector<8x96xf32>
    %146 = math.exp %145 : vector<8x96xf32>
    %cst_34 = arith.constant 1.000000e+00 : f32
    %147 = vector.broadcast %cst_34 : f32 to vector<8x96xf32>
    %148 = arith.addf %147, %146 : vector<8x96xf32>
    %149 = arith.divf %147, %148 : vector<8x96xf32>
    %150 = vector.extract_strided_slice %143 {offsets = [0, 96], sizes = [8, 32], strides = [1, 1]} : vector<8x128xf32> to vector<8x32xf32>
    %151 = math.tanh %150 : vector<8x32xf32>
    %152 = vector.extract_strided_slice %149 {offsets = [0, 0], sizes = [8, 32], strides = [1, 1]} : vector<8x96xf32> to vector<8x32xf32>
    %153 = vector.extract_strided_slice %149 {offsets = [0, 32], sizes = [8, 32], strides = [1, 1]} : vector<8x96xf32> to vector<8x32xf32>
    %154 = vector.extract_strided_slice %149 {offsets = [0, 64], sizes = [8, 32], strides = [1, 1]} : vector<8x96xf32> to vector<8x32xf32>
    %155 = arith.mulf %153, %130 : vector<8x32xf32>
    %156 = arith.mulf %152, %151 : vector<8x32xf32>
    %157 = arith.addf %155, %156 : vector<8x32xf32>
    %158 = math.tanh %157 : vector<8x32xf32>
    %159 = arith.mulf %154, %158 : vector<8x32xf32>
    %160 = arith.index_cast %c5_i32 : i32 to index
    %c0_35 = arith.constant 0 : index
    %c0_36 = arith.constant 0 : index
    %161 = vector.load %arg13[%160, %c0_35, %c0_36] : memref<8x8x32xf32, #tpu.memory_space<vmem>>, vector<1x8x32xf32>
    %162 = vector.shape_cast %161 : vector<1x8x32xf32> to vector<8x32xf32>
    %163 = vector.shape_cast %159 : vector<8x32xf32> to vector<1x8x32xf32>
    tpu.vector_store %arg13[%160, %c0_35, %c0_36], %163 {strides = array<i32>} : memref<8x8x32xf32, #tpu.memory_space<vmem>>, vector<1x8x32xf32>,
    %c6_i32 = arith.constant 6 : i32
    %164 = arith.index_cast %c6_i32 : i32 to index
    %c0_37 = arith.constant 0 : index
    %c0_38 = arith.constant 0 : index
    %165 = vector.load %arg1[%164, %c0_37, %c0_38] : memref<8x8x128xbf16, #tpu.memory_space<vmem>>, vector<1x8x128xbf16>
    %166 = vector.shape_cast %165 : vector<1x8x128xbf16> to vector<8x128xbf16>
    %167 = arith.truncf %159 : vector<8x32xf32> to vector<8x32xbf16>
    %cst_39 = arith.constant dense<0.000000e+00> : vector<8x128xf32>
    %168 = tpu.matmul %167, %0, %cst_39 {dimension_numbers = #tpu.dot_dimension_numbers<[1], [0], [0], [1], [0, 0, 1, 1], [], []>} : vector<8x32xbf16>, vector<32x128xbf16>, vector<8x128xf32> -> vector<8x128xf32>
    %169 = arith.extf %166 : vector<8x128xbf16> to vector<8x128xf32>
    %170 = arith.addf %169, %168 : vector<8x128xf32>
    %171 = vector.extract_strided_slice %170 {offsets = [0, 0], sizes = [8, 96], strides = [1, 1]} : vector<8x128xf32> to vector<8x96xf32>
    %172 = arith.negf %171 : vector<8x96xf32>
    %173 = math.exp %172 : vector<8x96xf32>
    %cst_40 = arith.constant 1.000000e+00 : f32
    %174 = vector.broadcast %cst_40 : f32 to vector<8x96xf32>
    %175 = arith.addf %174, %173 : vector<8x96xf32>
    %176 = arith.divf %174, %175 : vector<8x96xf32>
    %177 = vector.extract_strided_slice %170 {offsets = [0, 96], sizes = [8, 32], strides = [1, 1]} : vector<8x128xf32> to vector<8x32xf32>
    %178 = math.tanh %177 : vector<8x32xf32>
    %179 = vector.extract_strided_slice %176 {offsets = [0, 0], sizes = [8, 32], strides = [1, 1]} : vector<8x96xf32> to vector<8x32xf32>
    %180 = vector.extract_strided_slice %176 {offsets = [0, 32], sizes = [8, 32], strides = [1, 1]} : vector<8x96xf32> to vector<8x32xf32>
    %181 = vector.extract_strided_slice %176 {offsets = [0, 64], sizes = [8, 32], strides = [1, 1]} : vector<8x96xf32> to vector<8x32xf32>
    %182 = arith.mulf %180, %157 : vector<8x32xf32>
    %183 = arith.mulf %179, %178 : vector<8x32xf32>
    %184 = arith.addf %182, %183 : vector<8x32xf32>
    %185 = math.tanh %184 : vector<8x32xf32>
    %186 = arith.mulf %181, %185 : vector<8x32xf32>
    %187 = arith.index_cast %c6_i32 : i32 to index
    %c0_41 = arith.constant 0 : index
    %c0_42 = arith.constant 0 : index
    %188 = vector.load %arg13[%187, %c0_41, %c0_42] : memref<8x8x32xf32, #tpu.memory_space<vmem>>, vector<1x8x32xf32>
    %189 = vector.shape_cast %188 : vector<1x8x32xf32> to vector<8x32xf32>
    %190 = vector.shape_cast %186 : vector<8x32xf32> to vector<1x8x32xf32>
    tpu.vector_store %arg13[%187, %c0_41, %c0_42], %190 {strides = array<i32>} : memref<8x8x32xf32, #tpu.memory_space<vmem>>, vector<1x8x32xf32>,
    %c7_i32 = arith.constant 7 : i32
    %191 = arith.index_cast %c7_i32 : i32 to index
    %c0_43 = arith.constant 0 : index
    %c0_44 = arith.constant 0 : index
    %192 = vector.load %arg1[%191, %c0_43, %c0_44] : memref<8x8x128xbf16, #tpu.memory_space<vmem>>, vector<1x8x128xbf16>
    %193 = vector.shape_cast %192 : vector<1x8x128xbf16> to vector<8x128xbf16>
    %194 = arith.truncf %186 : vector<8x32xf32> to vector<8x32xbf16>
    %cst_45 = arith.constant dense<0.000000e+00> : vector<8x128xf32>
    %195 = tpu.matmul %194, %0, %cst_45 {dimension_numbers = #tpu.dot_dimension_numbers<[1], [0], [0], [1], [0, 0, 1, 1], [], []>} : vector<8x32xbf16>, vector<32x128xbf16>, vector<8x128xf32> -> vector<8x128xf32>
    %196 = arith.extf %193 : vector<8x128xbf16> to vector<8x128xf32>
    %197 = arith.addf %196, %195 : vector<8x128xf32>
    %198 = vector.extract_strided_slice %197 {offsets = [0, 0], sizes = [8, 96], strides = [1, 1]} : vector<8x128xf32> to vector<8x96xf32>
    %199 = arith.negf %198 : vector<8x96xf32>
    %200 = math.exp %199 : vector<8x96xf32>
    %cst_46 = arith.constant 1.000000e+00 : f32
    %201 = vector.broadcast %cst_46 : f32 to vector<8x96xf32>
    %202 = arith.addf %201, %200 : vector<8x96xf32>
    %203 = arith.divf %201, %202 : vector<8x96xf32>
    %204 = vector.extract_strided_slice %197 {offsets = [0, 96], sizes = [8, 32], strides = [1, 1]} : vector<8x128xf32> to vector<8x32xf32>
    %205 = math.tanh %204 : vector<8x32xf32>
    %206 = vector.extract_strided_slice %203 {offsets = [0, 0], sizes = [8, 32], strides = [1, 1]} : vector<8x96xf32> to vector<8x32xf32>
    %207 = vector.extract_strided_slice %203 {offsets = [0, 32], sizes = [8, 32], strides = [1, 1]} : vector<8x96xf32> to vector<8x32xf32>
    %208 = vector.extract_strided_slice %203 {offsets = [0, 64], sizes = [8, 32], strides = [1, 1]} : vector<8x96xf32> to vector<8x32xf32>
    %209 = arith.mulf %207, %184 : vector<8x32xf32>
    %210 = arith.mulf %206, %205 : vector<8x32xf32>
    %211 = arith.addf %209, %210 : vector<8x32xf32>
    %212 = math.tanh %211 : vector<8x32xf32>
    %213 = arith.mulf %208, %212 : vector<8x32xf32>
    %214 = arith.index_cast %c7_i32 : i32 to index
    %c0_47 = arith.constant 0 : index
    %c0_48 = arith.constant 0 : index
    %215 = vector.load %arg13[%214, %c0_47, %c0_48] : memref<8x8x32xf32, #tpu.memory_space<vmem>>, vector<1x8x32xf32>
    %216 = vector.shape_cast %215 : vector<1x8x32xf32> to vector<8x32xf32>
    %217 = vector.shape_cast %213 : vector<8x32xf32> to vector<1x8x32xf32>
    tpu.vector_store %arg13[%214, %c0_47, %c0_48], %217 {strides = array<i32>} : memref<8x8x32xf32, #tpu.memory_space<vmem>>, vector<1x8x32xf32>,
    %c8_i32 = arith.constant 8 : i32
    %c0_49 = arith.constant 0 : index
    %c0_50 = arith.constant 0 : index
    %c0_51 = arith.constant 0 : index
    %218 = vector.load %arg13[%c0_49, %c0_50, %c0_51] : memref<8x8x32xf32, #tpu.memory_space<vmem>>, vector<8x8x32xf32>
    %219 = vector.extract_strided_slice %218 {offsets = [0, 0, 0], sizes = [8, 8, 16], strides = [1, 1, 1]} : vector<8x8x32xf32> to vector<8x8x16xf32>
    %220 = vector.extract_strided_slice %218 {offsets = [7, 0, 16], sizes = [1, 8, 16], strides = [1, 1, 1]} : vector<8x8x32xf32> to vector<1x8x16xf32>
    %221 = vector.shape_cast %220 : vector<1x8x16xf32> to vector<8x16xf32>
    %222 = vector.shape_cast %221 : vector<8x16xf32> to vector<1x8x16xf32>
    %223 = vector.extract_strided_slice %218 {offsets = [6, 0, 16], sizes = [1, 8, 16], strides = [1, 1, 1]} : vector<8x8x32xf32> to vector<1x8x16xf32>
    %224 = vector.shape_cast %223 : vector<1x8x16xf32> to vector<8x16xf32>
    %225 = vector.shape_cast %224 : vector<8x16xf32> to vector<1x8x16xf32>
    %226 = vector.extract_strided_slice %218 {offsets = [5, 0, 16], sizes = [1, 8, 16], strides = [1, 1, 1]} : vector<8x8x32xf32> to vector<1x8x16xf32>
    %227 = vector.shape_cast %226 : vector<1x8x16xf32> to vector<8x16xf32>
    %228 = vector.shape_cast %227 : vector<8x16xf32> to vector<1x8x16xf32>
    %229 = vector.extract_strided_slice %218 {offsets = [4, 0, 16], sizes = [1, 8, 16], strides = [1, 1, 1]} : vector<8x8x32xf32> to vector<1x8x16xf32>
    %230 = vector.shape_cast %229 : vector<1x8x16xf32> to vector<8x16xf32>
    %231 = vector.shape_cast %230 : vector<8x16xf32> to vector<1x8x16xf32>
    %232 = vector.extract_strided_slice %218 {offsets = [3, 0, 16], sizes = [1, 8, 16], strides = [1, 1, 1]} : vector<8x8x32xf32> to vector<1x8x16xf32>
    %233 = vector.shape_cast %232 : vector<1x8x16xf32> to vector<8x16xf32>
    %234 = vector.shape_cast %233 : vector<8x16xf32> to vector<1x8x16xf32>
    %235 = vector.extract_strided_slice %218 {offsets = [2, 0, 16], sizes = [1, 8, 16], strides = [1, 1, 1]} : vector<8x8x32xf32> to vector<1x8x16xf32>
    %236 = vector.shape_cast %235 : vector<1x8x16xf32> to vector<8x16xf32>
    %237 = vector.shape_cast %236 : vector<8x16xf32> to vector<1x8x16xf32>
    %238 = vector.extract_strided_slice %218 {offsets = [1, 0, 16], sizes = [1, 8, 16], strides = [1, 1, 1]} : vector<8x8x32xf32> to vector<1x8x16xf32>
    %239 = vector.shape_cast %238 : vector<1x8x16xf32> to vector<8x16xf32>
    %240 = vector.shape_cast %239 : vector<8x16xf32> to vector<1x8x16xf32>
    %241 = vector.extract_strided_slice %218 {offsets = [0, 0, 16], sizes = [1, 8, 16], strides = [1, 1, 1]} : vector<8x8x32xf32> to vector<1x8x16xf32>
    %242 = vector.shape_cast %241 : vector<1x8x16xf32> to vector<8x16xf32>
    %243 = vector.shape_cast %242 : vector<8x16xf32> to vector<1x8x16xf32>
    %244 = tpu.concatenate %222, %225, %228, %231, %234, %237, %240, %243 in 0 : vector<1x8x16xf32>, vector<1x8x16xf32>, vector<1x8x16xf32>, vector<1x8x16xf32>, vector<1x8x16xf32>, vector<1x8x16xf32>, vector<1x8x16xf32>, vector<1x8x16xf32> -> vector<8x8x16xf32>
    %245 = tpu.concatenate %219, %244 in 2 : vector<8x8x16xf32>, vector<8x8x16xf32> -> vector<8x8x32xf32>
    %246 = vector.shape_cast %245 : vector<8x8x32xf32> to vector<64x32xf32>
    %247 = vector.extract_strided_slice %245 {offsets = [7, 0, 0], sizes = [1, 8, 32], strides = [1, 1, 1]} : vector<8x8x32xf32> to vector<1x8x32xf32>
    %248 = vector.shape_cast %247 : vector<1x8x32xf32> to vector<8x32xf32>
    %249 = arith.truncf %248 : vector<8x32xf32> to vector<8x32xbf16>
    %c0_52 = arith.constant 0 : index
    %c0_53 = arith.constant 0 : index
    %250 = vector.load %arg4[%c0_52, %c0_53] : memref<32x128xbf16, #tpu.memory_space<vmem>>, vector<32x128xbf16>
    %cst_54 = arith.constant dense<0.000000e+00> : vector<8x128xf32>
    %251 = tpu.matmul %249, %250, %cst_54 {dimension_numbers = #tpu.dot_dimension_numbers<[1], [0], [0], [1], [0, 0, 1, 1], [], []>} : vector<8x32xbf16>, vector<32x128xbf16>, vector<8x128xf32> -> vector<8x128xf32>
    %c0_55 = arith.constant 0 : index
    %c0_56 = arith.constant 0 : index
    %252 = vector.load %arg5[%c0_55, %c0_56] : memref<1x128xf32, #tpu.memory_space<vmem>>, vector<1x128xf32>
    %253 = vector.broadcast %252 : vector<1x128xf32> to vector<8x128xf32>
    %254 = arith.addf %251, %253 : vector<8x128xf32>
    %255 = arith.truncf %246 : vector<64x32xf32> to vector<64x32xbf16>
    %c0_57 = arith.constant 0 : index
    %c0_58 = arith.constant 0 : index
    %256 = vector.load %arg3[%c0_57, %c0_58] : memref<32x128xbf16, #tpu.memory_space<vmem>>, vector<32x128xbf16>
    %cst_59 = arith.constant dense<0.000000e+00> : vector<64x128xf32>
    %257 = tpu.matmul %255, %256, %cst_59 {dimension_numbers = #tpu.dot_dimension_numbers<[1], [0], [0], [1], [0, 0, 1, 1], [], []>} : vector<64x32xbf16>, vector<32x128xbf16>, vector<64x128xf32> -> vector<64x128xf32>
    %258 = vector.shape_cast %257 : vector<64x128xf32> to vector<8x8x128xf32>
    %259 = vector.shape_cast %254 : vector<8x128xf32> to vector<1x8x128xf32>
    %260 = vector.broadcast %259 : vector<1x8x128xf32> to vector<8x8x128xf32>
    %261 = arith.addf %258, %260 : vector<8x8x128xf32>
    %cst_60 = arith.constant 0.000000e+00 : f32
    %262 = vector.broadcast %cst_60 : f32 to vector<8x8x128xf32>
    %263 = arith.maximumf %261, %262 : vector<8x8x128xf32>
    %c0_61 = arith.constant 0 : index
    %c0_62 = arith.constant 0 : index
    %264 = vector.load %arg6[%c0_61, %c0_62] : memref<1x128xf32, #tpu.memory_space<vmem>>, vector<1x128xf32>
    %265 = vector.shape_cast %264 : vector<1x128xf32> to vector<1x1x128xf32>
    %266 = vector.broadcast %265 : vector<1x1x128xf32> to vector<8x8x128xf32>
    %267 = arith.mulf %263, %266 : vector<8x8x128xf32>
    %cst_63 = arith.constant dense<0.000000e+00> : vector<8x8xf32>
    %268 = vector.multi_reduction <add>, %267, %cst_63 [2] : vector<8x8x128xf32> to vector<8x8xf32>
    %269 = vector.shape_cast %268 : vector<8x8xf32> to vector<8x8x1xf32>
    %c0_64 = arith.constant 0 : index
    %c0_65 = arith.constant 0 : index
    %270 = vector.load %arg7[%c0_64, %c0_65] : memref<1x1xf32, #tpu.memory_space<vmem>>, vector<1x1xf32>
    %271 = vector.shape_cast %270 : vector<1x1xf32> to vector<1x1x1xf32>
    %272 = vector.broadcast %271 : vector<1x1x1xf32> to vector<8x8x1xf32>
    %273 = arith.addf %269, %272 : vector<8x8x1xf32>
    %cst_66 = arith.constant dense<0xFF800000> : vector<8x1xf32>
    %274 = vector.multi_reduction <maximumf>, %273, %cst_66 [0] : vector<8x8x1xf32> to vector<8x1xf32>
    %275 = vector.shape_cast %274 : vector<8x1xf32> to vector<1x8x1xf32>
    %276 = vector.broadcast %275 : vector<1x8x1xf32> to vector<8x8x1xf32>
    %277 = arith.subf %273, %276 : vector<8x8x1xf32>
    %278 = math.exp %277 : vector<8x8x1xf32>
    %cst_67 = arith.constant dense<0.000000e+00> : vector<8x1xf32>
    %279 = vector.multi_reduction <add>, %278, %cst_67 [0] : vector<8x8x1xf32> to vector<8x1xf32>
    %280 = vector.shape_cast %279 : vector<8x1xf32> to vector<1x8x1xf32>
    %281 = vector.broadcast %280 : vector<1x8x1xf32> to vector<8x8x1xf32>
    %282 = arith.divf %278, %281 : vector<8x8x1xf32>
    %283 = vector.broadcast %282 : vector<8x8x1xf32> to vector<8x8x32xf32>
    %284 = arith.mulf %245, %283 : vector<8x8x32xf32>
    %cst_68 = arith.constant dense<0.000000e+00> : vector<8x32xf32>
    %285 = vector.multi_reduction <add>, %284, %cst_68 [0] : vector<8x8x32xf32> to vector<8x32xf32>
    %286 = arith.truncf %285 : vector<8x32xf32> to vector<8x32xbf16>
    %c0_69 = arith.constant 0 : index
    %c0_70 = arith.constant 0 : index
    %287 = vector.load %arg8[%c0_69, %c0_70] : memref<32x32xbf16, #tpu.memory_space<vmem>>, vector<32x32xbf16>
    %cst_71 = arith.constant dense<0.000000e+00> : vector<8x32xf32>
    %288 = tpu.matmul %286, %287, %cst_71 {dimension_numbers = #tpu.dot_dimension_numbers<[1], [0], [0], [1], [0, 0, 1, 1], [], []>} : vector<8x32xbf16>, vector<32x32xbf16>, vector<8x32xf32> -> vector<8x32xf32>
    %c0_72 = arith.constant 0 : index
    %c0_73 = arith.constant 0 : index
    %289 = vector.load %arg9[%c0_72, %c0_73] : memref<1x32xf32, #tpu.memory_space<vmem>>, vector<1x32xf32>
    %290 = vector.broadcast %289 : vector<1x32xf32> to vector<8x32xf32>
    %291 = arith.addf %288, %290 : vector<8x32xf32>
    %cst_74 = arith.constant 0.000000e+00 : f32
    %292 = vector.broadcast %cst_74 : f32 to vector<8x32xf32>
    %293 = arith.maximumf %291, %292 : vector<8x32xf32>
    %294 = arith.truncf %293 : vector<8x32xf32> to vector<8x32xbf16>
    %c0_75 = arith.constant 0 : index
    %c0_76 = arith.constant 0 : index
    %295 = vector.load %arg10[%c0_75, %c0_76] : memref<32x2xbf16, #tpu.memory_space<vmem>>, vector<32x2xbf16>
    %cst_77 = arith.constant dense<0.000000e+00> : vector<8x2xf32>
    %296 = tpu.matmul %294, %295, %cst_77 {dimension_numbers = #tpu.dot_dimension_numbers<[1], [0], [0], [1], [0, 0, 1, 1], [], []>} : vector<8x32xbf16>, vector<32x2xbf16>, vector<8x2xf32> -> vector<8x2xf32>
    %c0_78 = arith.constant 0 : index
    %c0_79 = arith.constant 0 : index
    %297 = vector.load %arg11[%c0_78, %c0_79] : memref<1x2xf32, #tpu.memory_space<vmem>>, vector<1x2xf32>
    %298 = vector.broadcast %297 : vector<1x2xf32> to vector<8x2xf32>
    %299 = arith.addf %296, %298 : vector<8x2xf32>
    %c0_80 = arith.constant 0 : index
    %c0_81 = arith.constant 0 : index
    %300 = vector.load %arg12[%c0_80, %c0_81] : memref<8x2xf32, #tpu.memory_space<vmem>>, vector<8x2xf32>
    tpu.vector_store %arg12[%c0_80, %c0_81], %299 {strides = array<i32>} : memref<8x2xf32, #tpu.memory_space<vmem>>, vector<8x2xf32>,
    return
  }
  func.func @transform_0(%arg0: i32) -> (i32, i32, i32) {
    %c0_i32 = arith.constant 0 : i32
    %c0_i32_0 = arith.constant 0 : i32
    %c0_i32_1 = arith.constant 0 : i32
    return %c0_i32, %arg0, %c0_i32_0 : i32, i32, i32
  }
  func.func @transform_1(%arg0: i32) -> (i32, i32) {
    %c0_i32 = arith.constant 0 : i32
    %c0_i32_0 = arith.constant 0 : i32
    %c0_i32_1 = arith.constant 0 : i32
    return %c0_i32, %c0_i32_0 : i32, i32
  }
  func.func @transform_2(%arg0: i32) -> (i32, i32) {
    %c0_i32 = arith.constant 0 : i32
    %c0_i32_0 = arith.constant 0 : i32
    %c0_i32_1 = arith.constant 0 : i32
    return %c0_i32, %c0_i32_0 : i32, i32
  }
  func.func @transform_3(%arg0: i32) -> (i32, i32) {
    %c0_i32 = arith.constant 0 : i32
    %c0_i32_0 = arith.constant 0 : i32
    %c0_i32_1 = arith.constant 0 : i32
    return %c0_i32, %c0_i32_0 : i32, i32
  }
  func.func @transform_4(%arg0: i32) -> (i32, i32) {
    %c0_i32 = arith.constant 0 : i32
    %c0_i32_0 = arith.constant 0 : i32
    %c0_i32_1 = arith.constant 0 : i32
    return %c0_i32, %c0_i32_0 : i32, i32
  }
  func.func @transform_5(%arg0: i32) -> (i32, i32) {
    %c0_i32 = arith.constant 0 : i32
    %c0_i32_0 = arith.constant 0 : i32
    %c0_i32_1 = arith.constant 0 : i32
    return %c0_i32, %c0_i32_0 : i32, i32
  }
  func.func @transform_6(%arg0: i32) -> (i32, i32) {
    %c0_i32 = arith.constant 0 : i32
    %c0_i32_0 = arith.constant 0 : i32
    %c0_i32_1 = arith.constant 0 : i32
    return %c0_i32, %c0_i32_0 : i32, i32
  }
  func.func @transform_7(%arg0: i32) -> (i32, i32) {
    %c0_i32 = arith.constant 0 : i32
    %c0_i32_0 = arith.constant 0 : i32
    %c0_i32_1 = arith.constant 0 : i32
    return %c0_i32, %c0_i32_0 : i32, i32
  }
  func.func @transform_8(%arg0: i32) -> (i32, i32) {
    %c0_i32 = arith.constant 0 : i32
    %c0_i32_0 = arith.constant 0 : i32
    %c0_i32_1 = arith.constant 0 : i32
    return %c0_i32, %c0_i32_0 : i32, i32
  }
  func.func @transform_9(%arg0: i32) -> (i32, i32) {
    %c0_i32 = arith.constant 0 : i32
    %c0_i32_0 = arith.constant 0 : i32
    %c0_i32_1 = arith.constant 0 : i32
    return %c0_i32, %c0_i32_0 : i32, i32
  }
  func.func @transform_10(%arg0: i32) -> (i32, i32) {
    %c0_i32 = arith.constant 0 : i32
    %c0_i32_0 = arith.constant 0 : i32
    %c0_i32_1 = arith.constant 0 : i32
    return %c0_i32, %c0_i32_0 : i32, i32
  }
  func.func @transform_11(%arg0: i32) -> (i32, i32) {
    %c0_i32 = arith.constant 0 : i32
    %c0_i32_0 = arith.constant 0 : i32
    return %arg0, %c0_i32 : i32, i32
  }
}

</mosaic_0001>

<llo_original>
// kernel: tile.3
$region0: #{tile.3}
  #allocation0 [shape = 's32[1]{0}', space=sflag, size = 0x4, scoped, tag = 'scoped memory for tile.3']
  %s0 = inlined_call_operand.<no memory space> [shape: f32[], index: 0, kind: input, shape index: {}]
  %s1 = inlined_call_operand.vmem [shape: f32[104], index: 1, kind: output, shape index: {}]
  %v2 = vstv %s0
  %3 = vst [vmem:[%s1] sm:$0x1] %v2

// kernel: tile.2
$region0: #{tile.2}
  #allocation0 [shape = 's32[1]{0}', space=sflag, size = 0x4, scoped, tag = 'scoped memory for tile.2']
  %s0 = inlined_call_operand.<no memory space> [shape: f32[], index: 0, kind: input, shape index: {}]
  %s1 = inlined_call_operand.vmem [shape: f32[176], index: 1, kind: output, shape index: {}]
  %v2 = vstv %s0
  %3 = vst [vmem:[%s1] sm:$0x3] %v2

// kernel: _lambda_.2
$region0: #{_lambda_.2}
  #allocation0 [shape = 'u32[]', space=smem, size = 0x4, offset = 0x4, fixed_abs, tag = 'smem constant byte address 0x4 - core index']
  #allocation1 [shape = 'u32[144,128]{1,0:T(1,128)}', space=vmem, size = 0x12000, scoped, tag = 'internal scratch']
  %s0 = inlined_call_operand.vmem [shape: bf16[16,64], index: 0, kind: input, shape index: {}]
  %s1 = inlined_call_operand.vmem [shape: bf16[64,128], index: 1, kind: input, shape index: {}]
  %s2 = inlined_call_operand.vmem [shape: f32[1,128], index: 2, kind: input, shape index: {}]
  %s3 = inlined_call_operand.vmem [shape: bf16[128,256], index: 3, kind: input, shape index: {}]
  %s4 = inlined_call_operand.vmem [shape: f32[1,256], index: 4, kind: input, shape index: {}]
  %s5 = inlined_call_operand.vmem [shape: bf16[256,128], index: 5, kind: input, shape index: {}]
  %s6 = inlined_call_operand.vmem [shape: f32[1,128], index: 6, kind: input, shape index: {}]
  %s7 = inlined_call_operand.vmem [shape: bf16[16,128], index: 7, kind: output, shape index: {}]
  %s8 = sld [smem:[#allocation0]]
  $region38: #{_lambda_.2} parent=0
    _
  %s10 = ssub.s32 1, %s8
  %s11 = scalar_select 0, %s10, %s8
  // Predicated region
  $region2: #{_lambda_.2} parent=0 // pred_check
    _
  $region3: #{_lambda_.2} parent=0 // pred_check_branch
    %13 = sbr.rel (0) target = $region5
  $region4: #{_lambda_.2} parent=0 // pred_region
    _
  $region5: #{_lambda_.2} parent=0 // pred_fallthru
    _
  // Predicated region
  $region6: #{_lambda_.2} parent=0 // pred_check
    _
  $region7: #{_lambda_.2} parent=0 // pred_check_branch
    %15 = sbr.rel (0) target = $region9
  $region8: #{_lambda_.2} parent=0 // pred_region
    _
  $region9: #{_lambda_.2} parent=0 // pred_fallthru
    _
  // Predicated region
  $region10: #{_lambda_.2} parent=0 // pred_check
    _
  $region11: #{_lambda_.2} parent=0 // pred_check_branch
    %17 = sbr.rel (0) target = $region13
  $region12: #{_lambda_.2} parent=0 // pred_region
    _
  $region13: #{_lambda_.2} parent=0 // pred_fallthru
    _
  // Predicated region
  $region14: #{_lambda_.2} parent=0 // pred_check
    _
  $region15: #{_lambda_.2} parent=0 // pred_check_branch
    %19 = sbr.rel (0) target = $region17
  $region16: #{_lambda_.2} parent=0 // pred_region
    _
  $region17: #{_lambda_.2} parent=0 // pred_fallthru
    _
  // Predicated region
  $region18: #{_lambda_.2} parent=0 // pred_check
    _
  $region19: #{_lambda_.2} parent=0 // pred_check_branch
    %21 = sbr.rel (0) target = $region21
  $region20: #{_lambda_.2} parent=0 // pred_region
    _
  $region21: #{_lambda_.2} parent=0 // pred_fallthru
    _
  // Predicated region
  $region22: #{_lambda_.2} parent=0 // pred_check
    _
  $region23: #{_lambda_.2} parent=0 // pred_check_branch
    %23 = sbr.rel (0) target = $region25
  $region24: #{_lambda_.2} parent=0 // pred_region
    _
  $region25: #{_lambda_.2} parent=0 // pred_fallthru
    _
  // Predicated region
  $region26: #{_lambda_.2} parent=0 // pred_check
    _
  $region27: #{_lambda_.2} parent=0 // pred_check_branch
    %25 = sbr.rel (0) target = $region29
  $region28: #{_lambda_.2} parent=0 // pred_region
    _
  $region29: #{_lambda_.2} parent=0 // pred_fallthru
    _
  %v27 = vld [vmem:[%s0] sm:$0xf]
  %v28 = vld [vmem:[%s0 + $0x4] sm:$0xf]
  %v29 = vld [vmem:[%s1] sm:$0xf]
  %v30 = vld [vmem:[%s1 + $0x4] sm:$0xf]
  %v31 = vld [vmem:[%s1 + $0x8] sm:$0xf]
  %v32 = vld [vmem:[%s1 + $0xc] sm:$0xf]
  %v33 = vld [vmem:[%s1 + $0x10] sm:$0xf]
  %v34 = vld [vmem:[%s1 + $0x14] sm:$0xf]
  %v35 = vld [vmem:[%s1 + $0x18] sm:$0xf]
  %v36 = vld [vmem:[%s1 + $0x1c] sm:$0xf]
  %v37 = vld [vmem:[%s2] sm:$0x1]
  %v39 = vlaneseq
  %v40 = vshrl.u32 %v39, 7
  %v41 = vsub.s32 0, %v40
  %v42 = vrot.slane %v37, %v41
  %v46 = vunpack.c.l.b16 %v27
  %v47 = vunpack.c.l.b16 %v28
  %v48 = vpack.c.b16 %v47, %v46
  %v57 = vunpack.c.l.b16 %v29
  %v58 = vunpack.c.l.b16 %v30
  %v59 = vunpack.c.l.b16 %v31
  %v60 = vunpack.c.l.b16 %v32
  %v61 = vunpack.c.l.b16 %v33
  %v62 = vunpack.c.l.b16 %v34
  %v63 = vunpack.c.l.b16 %v35
  %v64 = vunpack.c.l.b16 %v36
  %v65 = vpack.c.b16 %v58, %v57
  %v66 = vpack.c.b16 %v60, %v59
  %v67 = vpack.c.b16 %v62, %v61
  %v68 = vpack.c.b16 %v64, %v63
  %vm73 = vcmask 523264
  %v75 = vsel %vm73, %v48, 0
  %77 = vmatprep.subr.bf16.mxu0 0
  %78 = vmatpush1.bf16.msra.mxu0 %v65
  %79 = vmatprep.subr.bf16.mxu0 0
  %80 = vmatpush1.bf16.msra.mxu0 %v66
  %81 = vmatprep.subr.bf16.mxu0 0
  %82 = vmatpush1.bf16.msra.mxu0 %v67
  %83 = vmatprep.subr.bf16.mxu0 0
  %84 = vmatpush1.bf16.msra.mxu0 %v68
  %85 = vmatprep.subr.bf16.mxu0 0
  %86 = vmatpush1.bf16.msra.mxu0 0
  %87 = vmatprep.subr.bf16.mxu0 0
  %88 = vmatpush1.bf16.msra.mxu0 0
  %89 = vmatprep.subr.bf16.mxu0 0
  %90 = vmatpush1.bf16.msra.mxu0 0
  %91 = vmatprep.subr.bf16.mxu0 0
  %92 = vmatpush1.bf16.msra.mxu0 0
  %93 = vmatprep.subr.bf16.mxu0 0
  %94 = vmatpush1.bf16.msra.mxu0 0
  %95 = vmatprep.subr.bf16.mxu0 0
  %96 = vmatpush1.bf16.msra.mxu0 0
  %97 = vmatprep.subr.bf16.mxu0 0
  %98 = vmatpush1.bf16.msra.mxu0 0
  %99 = vmatprep.subr.bf16.mxu0 0
  %100 = vmatpush1.bf16.msra.mxu0 0
  %101 = vmatprep.subr.bf16.mxu0 0
  %102 = vmatpush1.bf16.msra.mxu0 0
  %103 = vmatprep.subr.bf16.mxu0 0
  %104 = vmatpush1.bf16.msra.mxu0 0
  %105 = vmatprep.subr.bf16.mxu0 0
  %106 = vmatpush1.bf16.msra.mxu0 0
  %107 = vmatprep.subr.bf16.mxu0 0
  %108 = vmatpush1.bf16.msra.mxu0 0
  %109 = vmatprep.mubr.bf16.mxu0 0
  %110 = vmatmul.mubr.bf16.gmra.mrb[0].mxu0 %v75
  %v111 = vpop.f32.mrb[0].mxu0
  %v112 = vadd.f32 %v42, %v111
  %v113 = vpop.f32.mrb[0].mxu0
  %v114 = vpop.f32.mrb[0].mxu0
  %v115 = vadd.f32 %v42, %v114
  %v116 = vpop.f32.mrb[0].mxu0
  %117 = vdwg.mxu0
  %v118 = vmax.f32 %v112, 0.0
  %v119 = vmax.f32 %v115, 0.0
  %v120 = vpack.c.bf16 %v119, %v118
  %v121 = vld [vmem:[%s3] sm:$0xff]
  %v122 = vld [vmem:[%s3 + $0x8] sm:$0xff]
  %v123 = vld [vmem:[%s3 + $0x10] sm:$0xff]
  %v124 = vld [vmem:[%s3 + $0x18] sm:$0xff]
  %v125 = vld [vmem:[%s3 + $0x20] sm:$0xff]
  %v126 = vld [vmem:[%s3 + $0x28] sm:$0xff]
  %v127 = vld [vmem:[%s3 + $0x30] sm:$0xff]
  %v128 = vld [vmem:[%s3 + $0x38] sm:$0xff]
  %v129 = vld [vmem:[%s3 + $0x40] sm:$0xff]
  %v130 = vld [vmem:[%s3 + $0x48] sm:$0xff]
  %v131 = vld [vmem:[%s3 + $0x50] sm:$0xff]
  %v132 = vld [vmem:[%s3 + $0x58] sm:$0xff]
  %v133 = vld [vmem:[%s3 + $0x60] sm:$0xff]
  %v134 = vld [vmem:[%s3 + $0x68] sm:$0xff]
  %v135 = vld [vmem:[%s3 + $0x70] sm:$0xff]
  %v136 = vld [vmem:[%s3 + $0x78] sm:$0xff]
  %v137 = vld [vmem:[%s4] sm:$0x3]
  %v139 = vlaneseq
  %v140 = vshrl.u32 %v139, 7
  %v141 = vsub.s32 0, %v140
  %v142 = vrot.slane %v137, %v141
  %v143 = vlaneseq
  %v144 = vshrl.u32 %v143, 7
  %v145 = vsub.s32 1, %v144
  %v146 = vrot.slane %v137, %v145
  %v165 = vunpack.c.l.b16 %v121
  %v166 = vunpack.c.h.b16 %v121
  %v167 = vunpack.c.l.b16 %v122
  %v168 = vunpack.c.h.b16 %v122
  %v169 = vunpack.c.l.b16 %v123
  %v170 = vunpack.c.h.b16 %v123
  %v171 = vunpack.c.l.b16 %v124
  %v172 = vunpack.c.h.b16 %v124
  %v173 = vunpack.c.l.b16 %v125
  %v174 = vunpack.c.h.b16 %v125
  %v175 = vunpack.c.l.b16 %v126
  %v176 = vunpack.c.h.b16 %v126
  %v177 = vunpack.c.l.b16 %v127
  %v178 = vunpack.c.h.b16 %v127
  %v179 = vunpack.c.l.b16 %v128
  %v180 = vunpack.c.h.b16 %v128
  %v181 = vunpack.c.l.b16 %v129
  %v182 = vunpack.c.h.b16 %v129
  %v183 = vunpack.c.l.b16 %v130
  %v184 = vunpack.c.h.b16 %v130
  %v185 = vunpack.c.l.b16 %v131
  %v186 = vunpack.c.h.b16 %v131
  %v187 = vunpack.c.l.b16 %v132
  %v188 = vunpack.c.h.b16 %v132
  %v189 = vunpack.c.l.b16 %v133
  %v190 = vunpack.c.h.b16 %v133
  %v191 = vunpack.c.l.b16 %v134
  %v192 = vunpack.c.h.b16 %v134
  %v193 = vunpack.c.l.b16 %v135
  %v194 = vunpack.c.h.b16 %v135
  %v195 = vunpack.c.l.b16 %v136
  %v196 = vunpack.c.h.b16 %v136
  %v197 = vpack.c.b16 %v167, %v165
  %v198 = vpack.c.b16 %v168, %v166
  %v199 = vpack.c.b16 %v171, %v169
  %v200 = vpack.c.b16 %v172, %v170
  %v201 = vpack.c.b16 %v175, %v173
  %v202 = vpack.c.b16 %v176, %v174
  %v203 = vpack.c.b16 %v179, %v177
  %v204 = vpack.c.b16 %v180, %v178
  %v205 = vpack.c.b16 %v183, %v181
  %v206 = vpack.c.b16 %v184, %v182
  %v207 = vpack.c.b16 %v187, %v185
  %v208 = vpack.c.b16 %v188, %v186
  %v209 = vpack.c.b16 %v191, %v189
  %v210 = vpack.c.b16 %v192, %v190
  %v211 = vpack.c.b16 %v195, %v193
  %v212 = vpack.c.b16 %v196, %v194
  %229 = vmatprep.subr.bf16.mxu0 %v198
  %230 = vmatpush1.bf16.msra.mxu0 %v197
  %231 = vmatprep.subr.bf16.mxu0 %v200
  %232 = vmatpush1.bf16.msra.mxu0 %v199
  %233 = vmatprep.subr.bf16.mxu0 %v202
  %234 = vmatpush1.bf16.msra.mxu0 %v201
  %235 = vmatprep.subr.bf16.mxu0 %v204
  %236 = vmatpush1.bf16.msra.mxu0 %v203
  %237 = vmatprep.subr.bf16.mxu0 %v206
  %238 = vmatpush1.bf16.msra.mxu0 %v205
  %239 = vmatprep.subr.bf16.mxu0 %v208
  %240 = vmatpush1.bf16.msra.mxu0 %v207
  %241 = vmatprep.subr.bf16.mxu0 %v210
  %242 = vmatpush1.bf16.msra.mxu0 %v209
  %243 = vmatprep.subr.bf16.mxu0 %v212
  %244 = vmatpush1.bf16.msra.mxu0 %v211
  %245 = vmatprep.subr.bf16.mxu0 0
  %246 = vmatpush1.bf16.msra.mxu0 0
  %247 = vmatprep.subr.bf16.mxu0 0
  %248 = vmatpush1.bf16.msra.mxu0 0
  %249 = vmatprep.subr.bf16.mxu0 0
  %250 = vmatpush1.bf16.msra.mxu0 0
  %251 = vmatprep.subr.bf16.mxu0 0
  %252 = vmatpush1.bf16.msra.mxu0 0
  %253 = vmatprep.subr.bf16.mxu0 0
  %254 = vmatpush1.bf16.msra.mxu0 0
  %255 = vmatprep.subr.bf16.mxu0 0
  %256 = vmatpush1.bf16.msra.mxu0 0
  %257 = vmatprep.subr.bf16.mxu0 0
  %258 = vmatpush1.bf16.msra.mxu0 0
  %259 = vmatprep.subr.bf16.mxu0 0
  %260 = vmatpush1.bf16.msra.mxu0 0
  %261 = vmatprep.mubr.bf16.mxu0 0
  %262 = vmatmul.mubr.bf16.gmra.mrb[0].mxu0 %v120
  %v263 = vpop.f32.mrb[0].mxu0
  %v264 = vadd.f32 %v142, %v263
  %v265 = vpop.f32.mrb[0].mxu0
  %v266 = vadd.f32 %v146, %v265
  %v267 = vpop.f32.mrb[0].mxu0
  %v268 = vadd.f32 %v142, %v267
  %v269 = vpop.f32.mrb[0].mxu0
  %v270 = vadd.f32 %v146, %v269
  %271 = vdwg.mxu0
  %v272 = vmax.f32 %v264, 0.0
  %v273 = vmax.f32 %v266, 0.0
  %v274 = vmax.f32 %v268, 0.0
  %v275 = vmax.f32 %v270, 0.0
  %v276 = vpack.c.bf16 %v274, %v272
  %v277 = vpack.c.bf16 %v275, %v273
  %v278 = vld [vmem:[%s5] sm:$0xf]
  %v279 = vld [vmem:[%s5 + $0x4] sm:$0xf]
  %v280 = vld [vmem:[%s5 + $0x8] sm:$0xf]
  %v281 = vld [vmem:[%s5 + $0xc] sm:$0xf]
  %v282 = vld [vmem:[%s5 + $0x10] sm:$0xf]
  %v283 = vld [vmem:[%s5 + $0x14] sm:$0xf]
  %v284 = vld [vmem:[%s5 + $0x18] sm:$0xf]
  %v285 = vld [vmem:[%s5 + $0x1c] sm:$0xf]
  %v286 = vld [vmem:[%s5 + $0x20] sm:$0xf]
  %v287 = vld [vmem:[%s5 + $0x24] sm:$0xf]
  %v288 = vld [vmem:[%s5 + $0x28] sm:$0xf]
  %v289 = vld [vmem:[%s5 + $0x2c] sm:$0xf]
  %v290 = vld [vmem:[%s5 + $0x30] sm:$0xf]
  %v291 = vld [vmem:[%s5 + $0x34] sm:$0xf]
  %v292 = vld [vmem:[%s5 + $0x38] sm:$0xf]
  %v293 = vld [vmem:[%s5 + $0x3c] sm:$0xf]
  %v294 = vld [vmem:[%s5 + $0x40] sm:$0xf]
  %v295 = vld [vmem:[%s5 + $0x44] sm:$0xf]
  %v296 = vld [vmem:[%s5 + $0x48] sm:$0xf]
  %v297 = vld [vmem:[%s5 + $0x4c] sm:$0xf]
  %v298 = vld [vmem:[%s5 + $0x50] sm:$0xf]
  %v299 = vld [vmem:[%s5 + $0x54] sm:$0xf]
  %v300 = vld [vmem:[%s5 + $0x58] sm:$0xf]
  %v301 = vld [vmem:[%s5 + $0x5c] sm:$0xf]
  %v302 = vld [vmem:[%s5 + $0x60] sm:$0xf]
  %v303 = vld [vmem:[%s5 + $0x64] sm:$0xf]
  %v304 = vld [vmem:[%s5 + $0x68] sm:$0xf]
  %v305 = vld [vmem:[%s5 + $0x6c] sm:$0xf]
  %v306 = vld [vmem:[%s5 + $0x70] sm:$0xf]
  %v307 = vld [vmem:[%s5 + $0x74] sm:$0xf]
  %v308 = vld [vmem:[%s5 + $0x78] sm:$0xf]
  %v309 = vld [vmem:[%s5 + $0x7c] sm:$0xf]
  %v310 = vld [vmem:[%s6] sm:$0x1]
  %v312 = vlaneseq
  %v313 = vshrl.u32 %v312, 7
  %v314 = vsub.s32 0, %v313
  %v315 = vrot.slane %v310, %v314
  %v349 = vunpack.c.l.b16 %v278
  %v350 = vunpack.c.l.b16 %v279
  %v351 = vunpack.c.l.b16 %v280
  %v352 = vunpack.c.l.b16 %v281
  %v353 = vunpack.c.l.b16 %v282
  %v354 = vunpack.c.l.b16 %v283
  %v355 = vunpack.c.l.b16 %v284
  %v356 = vunpack.c.l.b16 %v285
  %v357 = vunpack.c.l.b16 %v286
  %v358 = vunpack.c.l.b16 %v287
  %v359 = vunpack.c.l.b16 %v288
  %v360 = vunpack.c.l.b16 %v289
  %v361 = vunpack.c.l.b16 %v290
  %v362 = vunpack.c.l.b16 %v291
  %v363 = vunpack.c.l.b16 %v292
  %v364 = vunpack.c.l.b16 %v293
  %v365 = vunpack.c.l.b16 %v294
  %v366 = vunpack.c.l.b16 %v295
  %v367 = vunpack.c.l.b16 %v296
  %v368 = vunpack.c.l.b16 %v297
  %v369 = vunpack.c.l.b16 %v298
  %v370 = vunpack.c.l.b16 %v299
  %v371 = vunpack.c.l.b16 %v300
  %v372 = vunpack.c.l.b16 %v301
  %v373 = vunpack.c.l.b16 %v302
  %v374 = vunpack.c.l.b16 %v303
  %v375 = vunpack.c.l.b16 %v304
  %v376 = vunpack.c.l.b16 %v305
  %v377 = vunpack.c.l.b16 %v306
  %v378 = vunpack.c.l.b16 %v307
  %v379 = vunpack.c.l.b16 %v308
  %v380 = vunpack.c.l.b16 %v309
  %v381 = vpack.c.b16 %v350, %v349
  %v382 = vpack.c.b16 %v352, %v351
  %v383 = vpack.c.b16 %v354, %v353
  %v384 = vpack.c.b16 %v356, %v355
  %v385 = vpack.c.b16 %v358, %v357
  %v386 = vpack.c.b16 %v360, %v359
  %v387 = vpack.c.b16 %v362, %v361
  %v388 = vpack.c.b16 %v364, %v363
  %v389 = vpack.c.b16 %v366, %v365
  %v390 = vpack.c.b16 %v368, %v367
  %v391 = vpack.c.b16 %v370, %v369
  %v392 = vpack.c.b16 %v372, %v371
  %v393 = vpack.c.b16 %v374, %v373
  %v394 = vpack.c.b16 %v376, %v375
  %v395 = vpack.c.b16 %v378, %v377
  %v396 = vpack.c.b16 %v380, %v379
  %413 = vmatprep.subr.bf16.mxu0 0
  %414 = vmatpush1.bf16.msra.mxu0 %v381
  %415 = vmatprep.subr.bf16.mxu0 0
  %416 = vmatpush1.bf16.msra.mxu0 %v382
  %417 = vmatprep.subr.bf16.mxu0 0
  %418 = vmatpush1.bf16.msra.mxu0 %v383
  %419 = vmatprep.subr.bf16.mxu0 0
  %420 = vmatpush1.bf16.msra.mxu0 %v384
  %421 = vmatprep.subr.bf16.mxu0 0
  %422 = vmatpush1.bf16.msra.mxu0 %v385
  %423 = vmatprep.subr.bf16.mxu0 0
  %424 = vmatpush1.bf16.msra.mxu0 %v386
  %425 = vmatprep.subr.bf16.mxu0 0
  %426 = vmatpush1.bf16.msra.mxu0 %v387
  %427 = vmatprep.subr.bf16.mxu0 0
  %428 = vmatpush1.bf16.msra.mxu0 %v388
  %429 = vmatprep.subr.bf16.mxu0 0
  %430 = vmatpush1.bf16.msra.mxu0 %v389
  %431 = vmatprep.subr.bf16.mxu0 0
  %432 = vmatpush1.bf16.msra.mxu0 %v390
  %433 = vmatprep.subr.bf16.mxu0 0
  %434 = vmatpush1.bf16.msra.mxu0 %v391
  %435 = vmatprep.subr.bf16.mxu0 0
  %436 = vmatpush1.bf16.msra.mxu0 %v392
  %437 = vmatprep.subr.bf16.mxu0 0
  %438 = vmatpush1.bf16.msra.mxu0 %v393
  %439 = vmatprep.subr.bf16.mxu0 0
  %440 = vmatpush1.bf16.msra.mxu0 %v394
  %441 = vmatprep.subr.bf16.mxu0 0
  %442 = vmatpush1.bf16.msra.mxu0 %v395
  %443 = vmatprep.subr.bf16.mxu0 0
  %444 = vmatpush1.bf16.msra.mxu0 %v396
  %445 = vmatprep.mubr.bf16.mxu0 %v277
  %446 = vmatmul.mubr.bf16.gmra.mrb[0].mxu0 %v276
  %v447 = vpop.f32.mrb[0].mxu0
  %v448 = vadd.f32 %v315, %v447
  %v449 = vpop.f32.mrb[0].mxu0
  %v450 = vpop.f32.mrb[0].mxu0
  %v451 = vadd.f32 %v315, %v450
  %v452 = vpop.f32.mrb[0].mxu0
  %453 = vdwg.mxu0
  %v454 = vpack.c.bf16 %v451, %v448
  %v456 = vunpack.c.l.b16 %v454
  %v457 = vunpack.c.h.b16 %v454
  %v458 = vpack.c.b16 %v456, %v456
  %v459 = vpack.c.b16 %v457, %v457
  %462 = vst [vmem:[%s7] sm:$0xf] %v458
  %463 = vst [vmem:[%s7 + $0x4] sm:$0xf] %v459
  // Predicated region
  $region30: #{_lambda_.2} parent=0 // pred_check
    _
  $region31: #{_lambda_.2} parent=0 // pred_check_branch
    %465 = sbr.rel (0) target = $region33
  $region32: #{_lambda_.2} parent=0 // pred_region
    _
  $region33: #{_lambda_.2} parent=0 // pred_fallthru
    _
  // Predicated region
  $region34: #{_lambda_.2} parent=0 // pred_check
    _
  $region35: #{_lambda_.2} parent=0 // pred_check_branch
    %467 = sbr.rel (0) target = $region37
  $region36: #{_lambda_.2} parent=0 // pred_region
    _
  $region37: #{_lambda_.2} parent=0 // pred_fallthru
    _

// kernel: _lambda_.3
$region0: #{_lambda_.3}
  #allocation0 [shape = 'u32[]', space=smem, size = 0x4, offset = 0x4, fixed_abs, tag = 'smem constant byte address 0x4 - core index']
  #allocation1 [shape = 'u32[144,128]{1,0:T(1,128)}', space=vmem, size = 0x12000, scoped, tag = 'internal scratch']
  #allocation2 [shape = 'f32[8,8,32]{2,1,0:T(8,128)}', space=vmem, size = 0x8000, scoped, tag = 'scratch operand']
  #allocation3 [shape = 'f32[1,1]{1,0:T(1,128)S(1)}', space=vmem, size = 0x200, scoped, tag = 'scoped memory for _lambda_.3']
  %s0 = inlined_call_operand.vmem [shape: bf16[8,8,128], index: 0, kind: input, shape index: {}]
  %s1 = inlined_call_operand.vmem [shape: bf16[32,128], index: 1, kind: input, shape index: {}]
  %s2 = inlined_call_operand.vmem [shape: bf16[32,128], index: 2, kind: input, shape index: {}]
  %s3 = inlined_call_operand.vmem [shape: bf16[32,128], index: 3, kind: input, shape index: {}]
  %s4 = inlined_call_operand.vmem [shape: f32[1,128], index: 4, kind: input, shape index: {}]
  %s5 = inlined_call_operand.vmem [shape: f32[1,128], index: 5, kind: input, shape index: {}]
  %s6 = inlined_call_operand.<no memory space> [shape: f32[1,1], index: 6, kind: input, shape index: {}]
  %s7 = inlined_call_operand.vmem [shape: bf16[32,32], index: 7, kind: input, shape index: {}]
  %s8 = inlined_call_operand.vmem [shape: f32[1,32], index: 8, kind: input, shape index: {}]
  %s9 = inlined_call_operand.vmem [shape: bf16[32,2], index: 9, kind: input, shape index: {}]
  %s10 = inlined_call_operand.vmem [shape: f32[1,2], index: 10, kind: input, shape index: {}]
  %s11 = inlined_call_operand.vmem [shape: f32[8,2], index: 11, kind: output, shape index: {}]
  %s12 = sld [smem:[#allocation0]]
  $region54: #{_lambda_.3} parent=0
    _
  %s14 = ssub.s32 1, %s12
  %s15 = scalar_select 0, %s14, %s12
  %v16 = vstv %s6
  %17 = vst [vmem:[#allocation3] sm:$0x1] %v16
  // Predicated region
  $region2: #{_lambda_.3} parent=0 // pred_check
    _
  $region3: #{_lambda_.3} parent=0 // pred_check_branch
    %19 = sbr.rel (0) target = $region5
  $region4: #{_lambda_.3} parent=0 // pred_region
    _
  $region5: #{_lambda_.3} parent=0 // pred_fallthru
    _
  // Predicated region
  $region6: #{_lambda_.3} parent=0 // pred_check
    _
  $region7: #{_lambda_.3} parent=0 // pred_check_branch
    %21 = sbr.rel (0) target = $region9
  $region8: #{_lambda_.3} parent=0 // pred_region
    _
  $region9: #{_lambda_.3} parent=0 // pred_fallthru
    _
  // Predicated region
  $region10: #{_lambda_.3} parent=0 // pred_check
    _
  $region11: #{_lambda_.3} parent=0 // pred_check_branch
    %23 = sbr.rel (0) target = $region13
  $region12: #{_lambda_.3} parent=0 // pred_region
    _
  $region13: #{_lambda_.3} parent=0 // pred_fallthru
    _
  // Predicated region
  $region14: #{_lambda_.3} parent=0 // pred_check
    _
  $region15: #{_lambda_.3} parent=0 // pred_check_branch
    %25 = sbr.rel (0) target = $region17
  $region16: #{_lambda_.3} parent=0 // pred_region
    _
  $region17: #{_lambda_.3} parent=0 // pred_fallthru
    _
  // Predicated region
  $region18: #{_lambda_.3} parent=0 // pred_check
    _
  $region19: #{_lambda_.3} parent=0 // pred_check_branch
    %27 = sbr.rel (0) target = $region21
  $region20: #{_lambda_.3} parent=0 // pred_region
    _
  $region21: #{_lambda_.3} parent=0 // pred_fallthru
    _
  // Predicated region
  $region22: #{_lambda_.3} parent=0 // pred_check
    _
  $region23: #{_lambda_.3} parent=0 // pred_check_branch
    %29 = sbr.rel (0) target = $region25
  $region24: #{_lambda_.3} parent=0 // pred_region
    _
  $region25: #{_lambda_.3} parent=0 // pred_fallthru
    _
  // Predicated region
  $region26: #{_lambda_.3} parent=0 // pred_check
    _
  $region27: #{_lambda_.3} parent=0 // pred_check_branch
    %31 = sbr.rel (0) target = $region29
  $region28: #{_lambda_.3} parent=0 // pred_region
    _
  $region29: #{_lambda_.3} parent=0 // pred_fallthru
    _
  // Predicated region
  $region30: #{_lambda_.3} parent=0 // pred_check
    _
  $region31: #{_lambda_.3} parent=0 // pred_check_branch
    %33 = sbr.rel (0) target = $region33
  $region32: #{_lambda_.3} parent=0 // pred_region
    _
  $region33: #{_lambda_.3} parent=0 // pred_fallthru
    _
  // Predicated region
  $region34: #{_lambda_.3} parent=0 // pred_check
    _
  $region35: #{_lambda_.3} parent=0 // pred_check_branch
    %35 = sbr.rel (0) target = $region37
  $region36: #{_lambda_.3} parent=0 // pred_region
    _
  $region37: #{_lambda_.3} parent=0 // pred_fallthru
    _
  // Predicated region
  $region38: #{_lambda_.3} parent=0 // pred_check
    _
  $region39: #{_lambda_.3} parent=0 // pred_check_branch
    %37 = sbr.rel (0) target = $region41
  $region40: #{_lambda_.3} parent=0 // pred_region
    _
  $region41: #{_lambda_.3} parent=0 // pred_fallthru
    _
  // Predicated region
  $region42: #{_lambda_.3} parent=0 // pred_check
    _
  $region43: #{_lambda_.3} parent=0 // pred_check_branch
    %39 = sbr.rel (0) target = $region45
  $region44: #{_lambda_.3} parent=0 // pred_region
    _
  $region45: #{_lambda_.3} parent=0 // pred_fallthru
    _
  %v41 = vld [vmem:[%s1] sm:$0xf]
  %v42 = vld [vmem:[%s1 + $0x4] sm:$0xf]
  %v43 = vld [vmem:[%s1 + $0x8] sm:$0xf]
  %v44 = vld [vmem:[%s1 + $0xc] sm:$0xf]
  %v45 = vld [vmem:[%s0] sm:$0xf]
  %v50 = vunpack.c.l.b16 %v41
  %v51 = vunpack.c.l.b16 %v42
  %v52 = vunpack.c.l.b16 %v43
  %v53 = vunpack.c.l.b16 %v44
  %v54 = vpack.c.b16 %v51, %v50
  %v55 = vpack.c.b16 %v53, %v52
  %vm58 = vcmask 261120
  %v60 = vsel %vm58, 0, 0
  %62 = vmatprep.subr.bf16.mxu0 0
  %63 = vmatpush1.bf16.msra.mxu0 %v54
  %64 = vmatprep.subr.bf16.mxu0 0
  %65 = vmatpush1.bf16.msra.mxu0 %v55
  %66 = vmatprep.subr.bf16.mxu0 0
  %67 = vmatpush1.bf16.msra.mxu0 0
  %68 = vmatprep.subr.bf16.mxu0 0
  %69 = vmatpush1.bf16.msra.mxu0 0
  %70 = vmatprep.subr.bf16.mxu0 0
  %71 = vmatpush1.bf16.msra.mxu0 0
  %72 = vmatprep.subr.bf16.mxu0 0
  %73 = vmatpush1.bf16.msra.mxu0 0
  %74 = vmatprep.subr.bf16.mxu0 0
  %75 = vmatpush1.bf16.msra.mxu0 0
  %76 = vmatprep.subr.bf16.mxu0 0
  %77 = vmatpush1.bf16.msra.mxu0 0
  %78 = vmatprep.subr.bf16.mxu0 0
  %79 = vmatpush1.bf16.msra.mxu0 0
  %80 = vmatprep.subr.bf16.mxu0 0
  %81 = vmatpush1.bf16.msra.mxu0 0
  %82 = vmatprep.subr.bf16.mxu0 0
  %83 = vmatpush1.bf16.msra.mxu0 0
  %84 = vmatprep.subr.bf16.mxu0 0
  %85 = vmatpush1.bf16.msra.mxu0 0
  %86 = vmatprep.subr.bf16.mxu0 0
  %87 = vmatpush1.bf16.msra.mxu0 0
  %88 = vmatprep.subr.bf16.mxu0 0
  %89 = vmatpush1.bf16.msra.mxu0 0
  %90 = vmatprep.subr.bf16.mxu0 0
  %91 = vmatpush1.bf16.msra.mxu0 0
  %92 = vmatprep.subr.bf16.mxu0 0
  %93 = vmatpush1.bf16.msra.mxu0 0
  %94 = vmatprep.mubr.bf16.mxu0 0
  %95 = vmatmul.mubr.bf16.gmra.mrb[0].mxu0 %v60
  %v96 = vpop.f32.mrb[0].mxu0
  %v97 = vadd.f32 0.0, %v96
  %v98 = vpop.f32.mrb[0].mxu0
  %v99 = vpop.f32.mrb[0].mxu0
  %v100 = vpop.f32.mrb[0].mxu0
  %101 = vdwg.mxu0
  %v102 = vunpack.c.l.bf16 %v45
  %v103 = vadd.f32 %v102, %v97
  %v104 = vxor.u32 %v103, 2147483648
  %v105 = vmul.f32 %v104, 1.442695
  %v106 = vpow.pop %v105
  %v107 = vadd.f32 %v106, 1.0
  %v108 = vrcp.pop %v107
  %v109 = vmul.f32 1.0, %v108
  %v110 = vtanh.pop %v103
  %v111 = vmul.f32 %v109, 0.0
  %113 = vrot.lane.b32.xlu0 %v110, 32
  %v114 = vpop.permute.xlu0 %113
  %v116 = vmul.f32 %v109, %v114
  %118 = vrot.lane.b32.xlu0 %v116, 32
  %v119 = vpop.permute.xlu0 %118
  %v121 = vadd.f32 %v111, %v119
  %v122 = vtanh.pop %v121
  %124 = vrot.lane.b32.xlu0 %v122, 32
  %v125 = vpop.permute.xlu0 %124
  %v127 = vmul.f32 %v109, %v125
  %129 = vrot.lane.b32.xlu0 %v127, 64
  %v130 = vpop.permute.xlu0 %129
  %132 = vst.msk [vmem:[#allocation2] sm:$0xff] %vm58, %v130
  %s133 = scalar_lea.vmem %s0, 4
  %v134 = vld [vmem:[%s133] sm:$0xf]
  %v135 = vpack.c.bf16 %v127, %v127
  %137 = vrot.lane.b32.xlu0 %v135, 64
  %v138 = vpop.permute.xlu0 %137
  %v140 = vsel %vm58, %v138, 0
  %142 = vmatprep.subr.bf16.mxu0 0
  %143 = vmatpush1.bf16.msra.mxu0 %v54
  %144 = vmatprep.subr.bf16.mxu0 0
  %145 = vmatpush1.bf16.msra.mxu0 %v55
  %146 = vmatprep.subr.bf16.mxu0 0
  %147 = vmatpush1.bf16.msra.mxu0 0
  %148 = vmatprep.subr.bf16.mxu0 0
  %149 = vmatpush1.bf16.msra.mxu0 0
  %150 = vmatprep.subr.bf16.mxu0 0
  %151 = vmatpush1.bf16.msra.mxu0 0
  %152 = vmatprep.subr.bf16.mxu0 0
  %153 = vmatpush1.bf16.msra.mxu0 0
  %154 = vmatprep.subr.bf16.mxu0 0
  %155 = vmatpush1.bf16.msra.mxu0 0
  %156 = vmatprep.subr.bf16.mxu0 0
  %157 = vmatpush1.bf16.msra.mxu0 0
  %158 = vmatprep.subr.bf16.mxu0 0
  %159 = vmatpush1.bf16.msra.mxu0 0
  %160 = vmatprep.subr.bf16.mxu0 0
  %161 = vmatpush1.bf16.msra.mxu0 0
  %162 = vmatprep.subr.bf16.mxu0 0
  %163 = vmatpush1.bf16.msra.mxu0 0
  %164 = vmatprep.subr.bf16.mxu0 0
  %165 = vmatpush1.bf16.msra.mxu0 0
  %166 = vmatprep.subr.bf16.mxu0 0
  %167 = vmatpush1.bf16.msra.mxu0 0
  %168 = vmatprep.subr.bf16.mxu0 0
  %169 = vmatpush1.bf16.msra.mxu0 0
  %170 = vmatprep.subr.bf16.mxu0 0
  %171 = vmatpush1.bf16.msra.mxu0 0
  %172 = vmatprep.subr.bf16.mxu0 0
  %173 = vmatpush1.bf16.msra.mxu0 0
  %174 = vmatprep.mubr.bf16.mxu0 0
  %175 = vmatmul.mubr.bf16.gmra.mrb[0].mxu0 %v140
  %v176 = vpop.f32.mrb[0].mxu0
  %v177 = vadd.f32 0.0, %v176
  %v178 = vpop.f32.mrb[0].mxu0
  %v179 = vpop.f32.mrb[0].mxu0
  %v180 = vpop.f32.mrb[0].mxu0
  %181 = vdwg.mxu0
  %v182 = vunpack.c.l.bf16 %v134
  %v183 = vadd.f32 %v182, %v177
  %v184 = vxor.u32 %v183, 2147483648
  %v185 = vmul.f32 %v184, 1.442695
  %v186 = vpow.pop %v185
  %v187 = vadd.f32 %v186, 1.0
  %v188 = vrcp.pop %v187
  %v189 = vmul.f32 1.0, %v188
  %v190 = vtanh.pop %v183
  %v191 = vmul.f32 %v189, %v121
  %193 = vrot.lane.b32.xlu0 %v190, 32
  %v194 = vpop.permute.xlu0 %193
  %v196 = vmul.f32 %v189, %v194
  %198 = vrot.lane.b32.xlu0 %v196, 32
  %v199 = vpop.permute.xlu0 %198
  %v201 = vadd.f32 %v191, %v199
  %v202 = vtanh.pop %v201
  %204 = vrot.lane.b32.xlu0 %v202, 32
  %v205 = vpop.permute.xlu0 %204
  %v207 = vmul.f32 %v189, %v205
  %209 = vrot.lane.b32.xlu0 %v207, 64
  %v210 = vpop.permute.xlu0 %209
  %s212 = scalar_lea.vmem [#allocation2], 8
  %213 = vst.msk [vmem:[%s212] sm:$0xff] %vm58, %v210
  %s214 = scalar_lea.vmem %s0, 8
  %v215 = vld [vmem:[%s214] sm:$0xf]
  %v216 = vpack.c.bf16 %v207, %v207
  %218 = vrot.lane.b32.xlu0 %v216, 64
  %v219 = vpop.permute.xlu0 %218
  %v221 = vsel %vm58, %v219, 0
  %223 = vmatprep.subr.bf16.mxu0 0
  %224 = vmatpush1.bf16.msra.mxu0 %v54
  %225 = vmatprep.subr.bf16.mxu0 0
  %226 = vmatpush1.bf16.msra.mxu0 %v55
  %227 = vmatprep.subr.bf16.mxu0 0
  %228 = vmatpush1.bf16.msra.mxu0 0
  %229 = vmatprep.subr.bf16.mxu0 0
  %230 = vmatpush1.bf16.msra.mxu0 0
  %231 = vmatprep.subr.bf16.mxu0 0
  %232 = vmatpush1.bf16.msra.mxu0 0
  %233 = vmatprep.subr.bf16.mxu0 0
  %234 = vmatpush1.bf16.msra.mxu0 0
  %235 = vmatprep.subr.bf16.mxu0 0
  %236 = vmatpush1.bf16.msra.mxu0 0
  %237 = vmatprep.subr.bf16.mxu0 0
  %238 = vmatpush1.bf16.msra.mxu0 0
  %239 = vmatprep.subr.bf16.mxu0 0
  %240 = vmatpush1.bf16.msra.mxu0 0
  %241 = vmatprep.subr.bf16.mxu0 0
  %242 = vmatpush1.bf16.msra.mxu0 0
  %243 = vmatprep.subr.bf16.mxu0 0
  %244 = vmatpush1.bf16.msra.mxu0 0
  %245 = vmatprep.subr.bf16.mxu0 0
  %246 = vmatpush1.bf16.msra.mxu0 0
  %247 = vmatprep.subr.bf16.mxu0 0
  %248 = vmatpush1.bf16.msra.mxu0 0
  %249 = vmatprep.subr.bf16.mxu0 0
  %250 = vmatpush1.bf16.msra.mxu0 0
  %251 = vmatprep.subr.bf16.mxu0 0
  %252 = vmatpush1.bf16.msra.mxu0 0
  %253 = vmatprep.subr.bf16.mxu0 0
  %254 = vmatpush1.bf16.msra.mxu0 0
  %255 = vmatprep.mubr.bf16.mxu0 0
  %256 = vmatmul.mubr.bf16.gmra.mrb[0].mxu0 %v221
  %v257 = vpop.f32.mrb[0].mxu0
  %v258 = vadd.f32 0.0, %v257
  %v259 = vpop.f32.mrb[0].mxu0
  %v260 = vpop.f32.mrb[0].mxu0
  %v261 = vpop.f32.mrb[0].mxu0
  %262 = vdwg.mxu0
  %v263 = vunpack.c.l.bf16 %v215
  %v264 = vadd.f32 %v263, %v258
  %v265 = vxor.u32 %v264, 2147483648
  %v266 = vmul.f32 %v265, 1.442695
  %v267 = vpow.pop %v266
  %v268 = vadd.f32 %v267, 1.0
  %v269 = vrcp.pop %v268
  %v270 = vmul.f32 1.0, %v269
  %v271 = vtanh.pop %v264
  %v272 = vmul.f32 %v270, %v201
  %274 = vrot.lane.b32.xlu0 %v271, 32
  %v275 = vpop.permute.xlu0 %274
  %v277 = vmul.f32 %v270, %v275
  %279 = vrot.lane.b32.xlu0 %v277, 32
  %v280 = vpop.permute.xlu0 %279
  %v282 = vadd.f32 %v272, %v280
  %v283 = vtanh.pop %v282
  %285 = vrot.lane.b32.xlu0 %v283, 32
  %v286 = vpop.permute.xlu0 %285
  %v288 = vmul.f32 %v270, %v286
  %290 = vrot.lane.b32.xlu0 %v288, 64
  %v291 = vpop.permute.xlu0 %290
  %s293 = scalar_lea.vmem [#allocation2], 16
  %294 = vst.msk [vmem:[%s293] sm:$0xff] %vm58, %v291
  %s295 = scalar_lea.vmem %s0, 12
  %v296 = vld [vmem:[%s295] sm:$0xf]
  %v297 = vpack.c.bf16 %v288, %v288
  %299 = vrot.lane.b32.xlu0 %v297, 64
  %v300 = vpop.permute.xlu0 %299
  %v302 = vsel %vm58, %v300, 0
  %304 = vmatprep.subr.bf16.mxu0 0
  %305 = vmatpush1.bf16.msra.mxu0 %v54
  %306 = vmatprep.subr.bf16.mxu0 0
  %307 = vmatpush1.bf16.msra.mxu0 %v55
  %308 = vmatprep.subr.bf16.mxu0 0
  %309 = vmatpush1.bf16.msra.mxu0 0
  %310 = vmatprep.subr.bf16.mxu0 0
  %311 = vmatpush1.bf16.msra.mxu0 0
  %312 = vmatprep.subr.bf16.mxu0 0
  %313 = vmatpush1.bf16.msra.mxu0 0
  %314 = vmatprep.subr.bf16.mxu0 0
  %315 = vmatpush1.bf16.msra.mxu0 0
  %316 = vmatprep.subr.bf16.mxu0 0
  %317 = vmatpush1.bf16.msra.mxu0 0
  %318 = vmatprep.subr.bf16.mxu0 0
  %319 = vmatpush1.bf16.msra.mxu0 0
  %320 = vmatprep.subr.bf16.mxu0 0
  %321 = vmatpush1.bf16.msra.mxu0 0
  %322 = vmatprep.subr.bf16.mxu0 0
  %323 = vmatpush1.bf16.msra.mxu0 0
  %324 = vmatprep.subr.bf16.mxu0 0
  %325 = vmatpush1.bf16.msra.mxu0 0
  %326 = vmatprep.subr.bf16.mxu0 0
  %327 = vmatpush1.bf16.msra.mxu0 0
  %328 = vmatprep.subr.bf16.mxu0 0
  %329 = vmatpush1.bf16.msra.mxu0 0
  %330 = vmatprep.subr.bf16.mxu0 0
  %331 = vmatpush1.bf16.msra.mxu0 0
  %332 = vmatprep.subr.bf16.mxu0 0
  %333 = vmatpush1.bf16.msra.mxu0 0
  %334 = vmatprep.subr.bf16.mxu0 0
  %335 = vmatpush1.bf16.msra.mxu0 0
  %336 = vmatprep.mubr.bf16.mxu0 0
  %337 = vmatmul.mubr.bf16.gmra.mrb[0].mxu0 %v302
  %v338 = vpop.f32.mrb[0].mxu0
  %v339 = vadd.f32 0.0, %v338
  %v340 = vpop.f32.mrb[0].mxu0
  %v341 = vpop.f32.mrb[0].mxu0
  %v342 = vpop.f32.mrb[0].mxu0
  %343 = vdwg.mxu0
  %v344 = vunpack.c.l.bf16 %v296
  %v345 = vadd.f32 %v344, %v339
  %v346 = vxor.u32 %v345, 2147483648
  %v347 = vmul.f32 %v346, 1.442695
  %v348 = vpow.pop %v347
  %v349 = vadd.f32 %v348, 1.0
  %v350 = vrcp.pop %v349
  %v351 = vmul.f32 1.0, %v350
  %v352 = vtanh.pop %v345
  %v353 = vmul.f32 %v351, %v282
  %355 = vrot.lane.b32.xlu0 %v352, 32
  %v356 = vpop.permute.xlu0 %355
  %v358 = vmul.f32 %v351, %v356
  %360 = vrot.lane.b32.xlu0 %v358, 32
  %v361 = vpop.permute.xlu0 %360
  %v363 = vadd.f32 %v353, %v361
  %v364 = vtanh.pop %v363
  %366 = vrot.lane.b32.xlu0 %v364, 32
  %v367 = vpop.permute.xlu0 %366
  %v369 = vmul.f32 %v351, %v367
  %371 = vrot.lane.b32.xlu0 %v369, 64
  %v372 = vpop.permute.xlu0 %371
  %s374 = scalar_lea.vmem [#allocation2], 24
  %375 = vst.msk [vmem:[%s374] sm:$0xff] %vm58, %v372
  %s376 = scalar_lea.vmem %s0, 16
  %v377 = vld [vmem:[%s376] sm:$0xf]
  %v378 = vpack.c.bf16 %v369, %v369
  %380 = vrot.lane.b32.xlu0 %v378, 64
  %v381 = vpop.permute.xlu0 %380
  %v383 = vsel %vm58, %v381, 0
  %385 = vmatprep.subr.bf16.mxu0 0
  %386 = vmatpush1.bf16.msra.mxu0 %v54
  %387 = vmatprep.subr.bf16.mxu0 0
  %388 = vmatpush1.bf16.msra.mxu0 %v55
  %389 = vmatprep.subr.bf16.mxu0 0
  %390 = vmatpush1.bf16.msra.mxu0 0
  %391 = vmatprep.subr.bf16.mxu0 0
  %392 = vmatpush1.bf16.msra.mxu0 0
  %393 = vmatprep.subr.bf16.mxu0 0
  %394 = vmatpush1.bf16.msra.mxu0 0
  %395 = vmatprep.subr.bf16.mxu0 0
  %396 = vmatpush1.bf16.msra.mxu0 0
  %397 = vmatprep.subr.bf16.mxu0 0
  %398 = vmatpush1.bf16.msra.mxu0 0
  %399 = vmatprep.subr.bf16.mxu0 0
  %400 = vmatpush1.bf16.msra.mxu0 0
  %401 = vmatprep.subr.bf16.mxu0 0
  %402 = vmatpush1.bf16.msra.mxu0 0
  %403 = vmatprep.subr.bf16.mxu0 0
  %404 = vmatpush1.bf16.msra.mxu0 0
  %405 = vmatprep.subr.bf16.mxu0 0
  %406 = vmatpush1.bf16.msra.mxu0 0
  %407 = vmatprep.subr.bf16.mxu0 0
  %408 = vmatpush1.bf16.msra.mxu0 0
  %409 = vmatprep.subr.bf16.mxu0 0
  %410 = vmatpush1.bf16.msra.mxu0 0
  %411 = vmatprep.subr.bf16.mxu0 0
  %412 = vmatpush1.bf16.msra.mxu0 0
  %413 = vmatprep.subr.bf16.mxu0 0
  %414 = vmatpush1.bf16.msra.mxu0 0
  %415 = vmatprep.subr.bf16.mxu0 0
  %416 = vmatpush1.bf16.msra.mxu0 0
  %417 = vmatprep.mubr.bf16.mxu0 0
  %418 = vmatmul.mubr.bf16.gmra.mrb[0].mxu0 %v383
  %v419 = vpop.f32.mrb[0].mxu0
  %v420 = vadd.f32 0.0, %v419
  %v421 = vpop.f32.mrb[0].mxu0
  %v422 = vpop.f32.mrb[0].mxu0
  %v423 = vpop.f32.mrb[0].mxu0
  %424 = vdwg.mxu0
  %v425 = vunpack.c.l.bf16 %v377
  %v426 = vadd.f32 %v425, %v420
  %v427 = vxor.u32 %v426, 2147483648
  %v428 = vmul.f32 %v427, 1.442695
  %v429 = vpow.pop %v428
  %v430 = vadd.f32 %v429, 1.0
  %v431 = vrcp.pop %v430
  %v432 = vmul.f32 1.0, %v431
  %v433 = vtanh.pop %v426
  %v434 = vmul.f32 %v432, %v363
  %436 = vrot.lane.b32.xlu0 %v433, 32
  %v437 = vpop.permute.xlu0 %436
  %v439 = vmul.f32 %v432, %v437
  %441 = vrot.lane.b32.xlu0 %v439, 32
  %v442 = vpop.permute.xlu0 %441
  %v444 = vadd.f32 %v434, %v442
  %v445 = vtanh.pop %v444
  %447 = vrot.lane.b32.xlu0 %v445, 32
  %v448 = vpop.permute.xlu0 %447
  %v450 = vmul.f32 %v432, %v448
  %452 = vrot.lane.b32.xlu0 %v450, 64
  %v453 = vpop.permute.xlu0 %452
  %s455 = scalar_lea.vmem [#allocation2], 32
  %456 = vst.msk [vmem:[%s455] sm:$0xff] %vm58, %v453
  %s457 = scalar_lea.vmem %s0, 20
  %v458 = vld [vmem:[%s457] sm:$0xf]
  %v459 = vpack.c.bf16 %v450, %v450
  %461 = vrot.lane.b32.xlu0 %v459, 64
  %v462 = vpop.permute.xlu0 %461
  %v464 = vsel %vm58, %v462, 0
  %466 = vmatprep.subr.bf16.mxu0 0
  %467 = vmatpush1.bf16.msra.mxu0 %v54
  %468 = vmatprep.subr.bf16.mxu0 0
  %469 = vmatpush1.bf16.msra.mxu0 %v55
  %470 = vmatprep.subr.bf16.mxu0 0
  %471 = vmatpush1.bf16.msra.mxu0 0
  %472 = vmatprep.subr.bf16.mxu0 0
  %473 = vmatpush1.bf16.msra.mxu0 0
  %474 = vmatprep.subr.bf16.mxu0 0
  %475 = vmatpush1.bf16.msra.mxu0 0
  %476 = vmatprep.subr.bf16.mxu0 0
  %477 = vmatpush1.bf16.msra.mxu0 0
  %478 = vmatprep.subr.bf16.mxu0 0
  %479 = vmatpush1.bf16.msra.mxu0 0
  %480 = vmatprep.subr.bf16.mxu0 0
  %481 = vmatpush1.bf16.msra.mxu0 0
  %482 = vmatprep.subr.bf16.mxu0 0
  %483 = vmatpush1.bf16.msra.mxu0 0
  %484 = vmatprep.subr.bf16.mxu0 0
  %485 = vmatpush1.bf16.msra.mxu0 0
  %486 = vmatprep.subr.bf16.mxu0 0
  %487 = vmatpush1.bf16.msra.mxu0 0
  %488 = vmatprep.subr.bf16.mxu0 0
  %489 = vmatpush1.bf16.msra.mxu0 0
  %490 = vmatprep.subr.bf16.mxu0 0
  %491 = vmatpush1.bf16.msra.mxu0 0
  %492 = vmatprep.subr.bf16.mxu0 0
  %493 = vmatpush1.bf16.msra.mxu0 0
  %494 = vmatprep.subr.bf16.mxu0 0
  %495 = vmatpush1.bf16.msra.mxu0 0
  %496 = vmatprep.subr.bf16.mxu0 0
  %497 = vmatpush1.bf16.msra.mxu0 0
  %498 = vmatprep.mubr.bf16.mxu0 0
  %499 = vmatmul.mubr.bf16.gmra.mrb[0].mxu0 %v464
  %v500 = vpop.f32.mrb[0].mxu0
  %v501 = vadd.f32 0.0, %v500
  %v502 = vpop.f32.mrb[0].mxu0
  %v503 = vpop.f32.mrb[0].mxu0
  %v504 = vpop.f32.mrb[0].mxu0
  %505 = vdwg.mxu0
  %v506 = vunpack.c.l.bf16 %v458
  %v507 = vadd.f32 %v506, %v501
  %v508 = vxor.u32 %v507, 2147483648
  %v509 = vmul.f32 %v508, 1.442695
  %v510 = vpow.pop %v509
  %v511 = vadd.f32 %v510, 1.0
  %v512 = vrcp.pop %v511
  %v513 = vmul.f32 1.0, %v512
  %v514 = vtanh.pop %v507
  %v515 = vmul.f32 %v513, %v444
  %517 = vrot.lane.b32.xlu0 %v514, 32
  %v518 = vpop.permute.xlu0 %517
  %v520 = vmul.f32 %v513, %v518
  %522 = vrot.lane.b32.xlu0 %v520, 32
  %v523 = vpop.permute.xlu0 %522
  %v525 = vadd.f32 %v515, %v523
  %v526 = vtanh.pop %v525
  %528 = vrot.lane.b32.xlu0 %v526, 32
  %v529 = vpop.permute.xlu0 %528
  %v531 = vmul.f32 %v513, %v529
  %533 = vrot.lane.b32.xlu0 %v531, 64
  %v534 = vpop.permute.xlu0 %533
  %s536 = scalar_lea.vmem [#allocation2], 40
  %537 = vst.msk [vmem:[%s536] sm:$0xff] %vm58, %v534
  %s538 = scalar_lea.vmem %s0, 24
  %v539 = vld [vmem:[%s538] sm:$0xf]
  %v540 = vpack.c.bf16 %v531, %v531
  %542 = vrot.lane.b32.xlu0 %v540, 64
  %v543 = vpop.permute.xlu0 %542
  %v545 = vsel %vm58, %v543, 0
  %547 = vmatprep.subr.bf16.mxu0 0
  %548 = vmatpush1.bf16.msra.mxu0 %v54
  %549 = vmatprep.subr.bf16.mxu0 0
  %550 = vmatpush1.bf16.msra.mxu0 %v55
  %551 = vmatprep.subr.bf16.mxu0 0
  %552 = vmatpush1.bf16.msra.mxu0 0
  %553 = vmatprep.subr.bf16.mxu0 0
  %554 = vmatpush1.bf16.msra.mxu0 0
  %555 = vmatprep.subr.bf16.mxu0 0
  %556 = vmatpush1.bf16.msra.mxu0 0
  %557 = vmatprep.subr.bf16.mxu0 0
  %558 = vmatpush1.bf16.msra.mxu0 0
  %559 = vmatprep.subr.bf16.mxu0 0
  %560 = vmatpush1.bf16.msra.mxu0 0
  %561 = vmatprep.subr.bf16.mxu0 0
  %562 = vmatpush1.bf16.msra.mxu0 0
  %563 = vmatprep.subr.bf16.mxu0 0
  %564 = vmatpush1.bf16.msra.mxu0 0
  %565 = vmatprep.subr.bf16.mxu0 0
  %566 = vmatpush1.bf16.msra.mxu0 0
  %567 = vmatprep.subr.bf16.mxu0 0
  %568 = vmatpush1.bf16.msra.mxu0 0
  %569 = vmatprep.subr.bf16.mxu0 0
  %570 = vmatpush1.bf16.msra.mxu0 0
  %571 = vmatprep.subr.bf16.mxu0 0
  %572 = vmatpush1.bf16.msra.mxu0 0
  %573 = vmatprep.subr.bf16.mxu0 0
  %574 = vmatpush1.bf16.msra.mxu0 0
  %575 = vmatprep.subr.bf16.mxu0 0
  %576 = vmatpush1.bf16.msra.mxu0 0
  %577 = vmatprep.subr.bf16.mxu0 0
  %578 = vmatpush1.bf16.msra.mxu0 0
  %579 = vmatprep.mubr.bf16.mxu0 0
  %580 = vmatmul.mubr.bf16.gmra.mrb[0].mxu0 %v545
  %v581 = vpop.f32.mrb[0].mxu0
  %v582 = vadd.f32 0.0, %v581
  %v583 = vpop.f32.mrb[0].mxu0
  %v584 = vpop.f32.mrb[0].mxu0
  %v585 = vpop.f32.mrb[0].mxu0
  %586 = vdwg.mxu0
  %v587 = vunpack.c.l.bf16 %v539
  %v588 = vadd.f32 %v587, %v582
  %v589 = vxor.u32 %v588, 2147483648
  %v590 = vmul.f32 %v589, 1.442695
  %v591 = vpow.pop %v590
  %v592 = vadd.f32 %v591, 1.0
  %v593 = vrcp.pop %v592
  %v594 = vmul.f32 1.0, %v593
  %v595 = vtanh.pop %v588
  %v596 = vmul.f32 %v594, %v525
  %598 = vrot.lane.b32.xlu0 %v595, 32
  %v599 = vpop.permute.xlu0 %598
  %v601 = vmul.f32 %v594, %v599
  %603 = vrot.lane.b32.xlu0 %v601, 32
  %v604 = vpop.permute.xlu0 %603
  %v606 = vadd.f32 %v596, %v604
  %v607 = vtanh.pop %v606
  %609 = vrot.lane.b32.xlu0 %v607, 32
  %v610 = vpop.permute.xlu0 %609
  %v612 = vmul.f32 %v594, %v610
  %614 = vrot.lane.b32.xlu0 %v612, 64
  %v615 = vpop.permute.xlu0 %614
  %s617 = scalar_lea.vmem [#allocation2], 48
  %618 = vst.msk [vmem:[%s617] sm:$0xff] %vm58, %v615
  %s619 = scalar_lea.vmem %s0, 28
  %v620 = vld [vmem:[%s619] sm:$0xf]
  %v621 = vpack.c.bf16 %v612, %v612
  %623 = vrot.lane.b32.xlu0 %v621, 64
  %v624 = vpop.permute.xlu0 %623
  %v626 = vsel %vm58, %v624, 0
  %628 = vmatprep.subr.bf16.mxu0 0
  %629 = vmatpush1.bf16.msra.mxu0 %v54
  %630 = vmatprep.subr.bf16.mxu0 0
  %631 = vmatpush1.bf16.msra.mxu0 %v55
  %632 = vmatprep.subr.bf16.mxu0 0
  %633 = vmatpush1.bf16.msra.mxu0 0
  %634 = vmatprep.subr.bf16.mxu0 0
  %635 = vmatpush1.bf16.msra.mxu0 0
  %636 = vmatprep.subr.bf16.mxu0 0
  %637 = vmatpush1.bf16.msra.mxu0 0
  %638 = vmatprep.subr.bf16.mxu0 0
  %639 = vmatpush1.bf16.msra.mxu0 0
  %640 = vmatprep.subr.bf16.mxu0 0
  %641 = vmatpush1.bf16.msra.mxu0 0
  %642 = vmatprep.subr.bf16.mxu0 0
  %643 = vmatpush1.bf16.msra.mxu0 0
  %644 = vmatprep.subr.bf16.mxu0 0
  %645 = vmatpush1.bf16.msra.mxu0 0
  %646 = vmatprep.subr.bf16.mxu0 0
  %647 = vmatpush1.bf16.msra.mxu0 0
  %648 = vmatprep.subr.bf16.mxu0 0
  %649 = vmatpush1.bf16.msra.mxu0 0
  %650 = vmatprep.subr.bf16.mxu0 0
  %651 = vmatpush1.bf16.msra.mxu0 0
  %652 = vmatprep.subr.bf16.mxu0 0
  %653 = vmatpush1.bf16.msra.mxu0 0
  %654 = vmatprep.subr.bf16.mxu0 0
  %655 = vmatpush1.bf16.msra.mxu0 0
  %656 = vmatprep.subr.bf16.mxu0 0
  %657 = vmatpush1.bf16.msra.mxu0 0
  %658 = vmatprep.subr.bf16.mxu0 0
  %659 = vmatpush1.bf16.msra.mxu0 0
  %660 = vmatprep.mubr.bf16.mxu0 0
  %661 = vmatmul.mubr.bf16.gmra.mrb[0].mxu0 %v626
  %v662 = vpop.f32.mrb[0].mxu0
  %v663 = vadd.f32 0.0, %v662
  %v664 = vpop.f32.mrb[0].mxu0
  %v665 = vpop.f32.mrb[0].mxu0
  %v666 = vpop.f32.mrb[0].mxu0
  %667 = vdwg.mxu0
  %v668 = vunpack.c.l.bf16 %v620
  %v669 = vadd.f32 %v668, %v663
  %v670 = vxor.u32 %v669, 2147483648
  %v671 = vmul.f32 %v670, 1.442695
  %v672 = vpow.pop %v671
  %v673 = vadd.f32 %v672, 1.0
  %v674 = vrcp.pop %v673
  %v675 = vmul.f32 1.0, %v674
  %v676 = vtanh.pop %v669
  %v677 = vmul.f32 %v675, %v606
  %679 = vrot.lane.b32.xlu0 %v676, 32
  %v680 = vpop.permute.xlu0 %679
  %v682 = vmul.f32 %v675, %v680
  %684 = vrot.lane.b32.xlu0 %v682, 32
  %v685 = vpop.permute.xlu0 %684
  %v687 = vadd.f32 %v677, %v685
  %v688 = vtanh.pop %v687
  %690 = vrot.lane.b32.xlu0 %v688, 32
  %v691 = vpop.permute.xlu0 %690
  %v693 = vmul.f32 %v675, %v691
  %695 = vrot.lane.b32.xlu0 %v693, 64
  %v696 = vpop.permute.xlu0 %695
  %s698 = scalar_lea.vmem [#allocation2], 56
  %699 = vst.msk [vmem:[%s698] sm:$0xff] %vm58, %v696
  %v700 = vld [vmem:[#allocation2] sm:$0xff]
  %v701 = vld [vmem:[#allocation2 + $0x8] sm:$0xff]
  %v702 = vld [vmem:[#allocation2 + $0x10] sm:$0xff]
  %v703 = vld [vmem:[#allocation2 + $0x18] sm:$0xff]
  %v704 = vld [vmem:[#allocation2 + $0x20] sm:$0xff]
  %v705 = vld [vmem:[#allocation2 + $0x28] sm:$0xff]
  %v706 = vld [vmem:[#allocation2 + $0x30] sm:$0xff]
  %v707 = vld [vmem:[#allocation2 + $0x38] sm:$0xff]
  %vm708 = vcmask 130048
  %v709 = vsel %vm708, %v700, %v707
  %v710 = vsel %vm708, %v701, %v706
  %v711 = vsel %vm708, %v702, %v705
  %v712 = vsel %vm708, %v703, %v704
  %v713 = vsel %vm708, %v704, %v703
  %v714 = vsel %vm708, %v705, %v702
  %v715 = vsel %vm708, %v706, %v701
  %v716 = vsel %vm708, %v707, %v700
  %v717 = vpack.c.bf16 %v716, %v716
  %v718 = vld [vmem:[%s3] sm:$0xf]
  %v719 = vld [vmem:[%s3 + $0x4] sm:$0xf]
  %v720 = vld [vmem:[%s3 + $0x8] sm:$0xf]
  %v721 = vld [vmem:[%s3 + $0xc] sm:$0xf]
  %v722 = vld [vmem:[%s4] sm:$0x1]
  %v724 = vlaneseq
  %v725 = vshrl.u32 %v724, 7
  %v726 = vsub.s32 0, %v725
  %v727 = vrot.slane %v722, %v726
  %v733 = vunpack.c.l.b16 %v718
  %v734 = vunpack.c.l.b16 %v719
  %v735 = vunpack.c.l.b16 %v720
  %v736 = vunpack.c.l.b16 %v721
  %v737 = vpack.c.b16 %v734, %v733
  %v738 = vpack.c.b16 %v736, %v735
  %v742 = vsel %vm58, %v717, 0
  %744 = vmatprep.subr.bf16.mxu0 0
  %745 = vmatpush1.bf16.msra.mxu0 %v737
  %746 = vmatprep.subr.bf16.mxu0 0
  %747 = vmatpush1.bf16.msra.mxu0 %v738
  %748 = vmatprep.subr.bf16.mxu0 0
  %749 = vmatpush1.bf16.msra.mxu0 0
  %750 = vmatprep.subr.bf16.mxu0 0
  %751 = vmatpush1.bf16.msra.mxu0 0
  %752 = vmatprep.subr.bf16.mxu0 0
  %753 = vmatpush1.bf16.msra.mxu0 0
  %754 = vmatprep.subr.bf16.mxu0 0
  %755 = vmatpush1.bf16.msra.mxu0 0
  %756 = vmatprep.subr.bf16.mxu0 0
  %757 = vmatpush1.bf16.msra.mxu0 0
  %758 = vmatprep.subr.bf16.mxu0 0
  %759 = vmatpush1.bf16.msra.mxu0 0
  %760 = vmatprep.subr.bf16.mxu0 0
  %761 = vmatpush1.bf16.msra.mxu0 0
  %762 = vmatprep.subr.bf16.mxu0 0
  %763 = vmatpush1.bf16.msra.mxu0 0
  %764 = vmatprep.subr.bf16.mxu0 0
  %765 = vmatpush1.bf16.msra.mxu0 0
  %766 = vmatprep.subr.bf16.mxu0 0
  %767 = vmatpush1.bf16.msra.mxu0 0
  %768 = vmatprep.subr.bf16.mxu0 0
  %769 = vmatpush1.bf16.msra.mxu0 0
  %770 = vmatprep.subr.bf16.mxu0 0
  %771 = vmatpush1.bf16.msra.mxu0 0
  %772 = vmatprep.subr.bf16.mxu0 0
  %773 = vmatpush1.bf16.msra.mxu0 0
  %774 = vmatprep.subr.bf16.mxu0 0
  %775 = vmatpush1.bf16.msra.mxu0 0
  %776 = vmatprep.mubr.bf16.mxu0 0
  %777 = vmatmul.mubr.bf16.gmra.mrb[0].mxu0 %v742
  %v778 = vpop.f32.mrb[0].mxu0
  %v779 = vadd.f32 %v727, %v778
  %v780 = vpop.f32.mrb[0].mxu0
  %v781 = vpop.f32.mrb[0].mxu0
  %v782 = vpop.f32.mrb[0].mxu0
  %783 = vdwg.mxu0
  %v784 = vpack.c.bf16 %v710, %v709
  %v785 = vpack.c.bf16 %v712, %v711
  %v786 = vpack.c.bf16 %v714, %v713
  %v787 = vpack.c.bf16 %v716, %v715
  %v788 = vld [vmem:[%s2] sm:$0xf]
  %v789 = vld [vmem:[%s2 + $0x4] sm:$0xf]
  %v790 = vld [vmem:[%s2 + $0x8] sm:$0xf]
  %v791 = vld [vmem:[%s2 + $0xc] sm:$0xf]
  %v796 = vunpack.c.l.b16 %v788
  %v797 = vunpack.c.l.b16 %v789
  %v798 = vunpack.c.l.b16 %v790
  %v799 = vunpack.c.l.b16 %v791
  %v800 = vpack.c.b16 %v797, %v796
  %v801 = vpack.c.b16 %v799, %v798
  %v805 = vsel %vm58, %v784, 0
  %v808 = vsel %vm58, %v785, 0
  %v811 = vsel %vm58, %v786, 0
  %v814 = vsel %vm58, %v787, 0
  %816 = vmatprep.subr.bf16.mxu0 0
  %817 = vmatpush1.bf16.msra.mxu0 %v800
  %818 = vmatprep.subr.bf16.mxu0 0
  %819 = vmatpush1.bf16.msra.mxu0 %v801
  %820 = vmatprep.subr.bf16.mxu0 0
  %821 = vmatpush1.bf16.msra.mxu0 0
  %822 = vmatprep.subr.bf16.mxu0 0
  %823 = vmatpush1.bf16.msra.mxu0 0
  %824 = vmatprep.subr.bf16.mxu0 0
  %825 = vmatpush1.bf16.msra.mxu0 0
  %826 = vmatprep.subr.bf16.mxu0 0
  %827 = vmatpush1.bf16.msra.mxu0 0
  %828 = vmatprep.subr.bf16.mxu0 0
  %829 = vmatpush1.bf16.msra.mxu0 0
  %830 = vmatprep.subr.bf16.mxu0 0
  %831 = vmatpush1.bf16.msra.mxu0 0
  %832 = vmatprep.subr.bf16.mxu0 0
  %833 = vmatpush1.bf16.msra.mxu0 0
  %834 = vmatprep.subr.bf16.mxu0 0
  %835 = vmatpush1.bf16.msra.mxu0 0
  %836 = vmatprep.subr.bf16.mxu0 0
  %837 = vmatpush1.bf16.msra.mxu0 0
  %838 = vmatprep.subr.bf16.mxu0 0
  %839 = vmatpush1.bf16.msra.mxu0 0
  %840 = vmatprep.subr.bf16.mxu0 0
  %841 = vmatpush1.bf16.msra.mxu0 0
  %842 = vmatprep.subr.bf16.mxu0 0
  %843 = vmatpush1.bf16.msra.mxu0 0
  %844 = vmatprep.subr.bf16.mxu0 0
  %845 = vmatpush1.bf16.msra.mxu0 0
  %846 = vmatprep.subr.bf16.mxu0 0
  %847 = vmatpush1.bf16.msra.mxu0 0
  %848 = vmatprep.mubr.bf16.mxu0 0
  %849 = vmatmul.mubr.bf16.gmra.mrb[0].mxu0 %v805
  %v850 = vpop.f32.mrb[0].mxu0
  %v851 = vadd.f32 0.0, %v850
  %v852 = vpop.f32.mrb[0].mxu0
  %v853 = vpop.f32.mrb[0].mxu0
  %v854 = vadd.f32 0.0, %v853
  %v855 = vpop.f32.mrb[0].mxu0
  %856 = vmatprep.mubr.bf16.mxu0 0
  %857 = vmatmul.mubr.bf16.gmra.mrb[0].mxu0 %v808
  %v858 = vpop.f32.mrb[0].mxu0
  %v859 = vadd.f32 0.0, %v858
  %v860 = vpop.f32.mrb[0].mxu0
  %v861 = vpop.f32.mrb[0].mxu0
  %v862 = vadd.f32 0.0, %v861
  %v863 = vpop.f32.mrb[0].mxu0
  %864 = vmatprep.mubr.bf16.mxu0 0
  %865 = vmatmul.mubr.bf16.gmra.mrb[0].mxu0 %v811
  %v866 = vpop.f32.mrb[0].mxu0
  %v867 = vadd.f32 0.0, %v866
  %v868 = vpop.f32.mrb[0].mxu0
  %v869 = vpop.f32.mrb[0].mxu0
  %v870 = vadd.f32 0.0, %v869
  %v871 = vpop.f32.mrb[0].mxu0
  %872 = vmatprep.mubr.bf16.mxu0 0
  %873 = vmatmul.mubr.bf16.gmra.mrb[0].mxu0 %v814
  %v874 = vpop.f32.mrb[0].mxu0
  %v875 = vadd.f32 0.0, %v874
  %v876 = vpop.f32.mrb[0].mxu0
  %v877 = vpop.f32.mrb[0].mxu0
  %v878 = vadd.f32 0.0, %v877
  %v879 = vpop.f32.mrb[0].mxu0
  %880 = vdwg.mxu0
  %v881 = vadd.f32 %v851, %v779
  %v882 = vadd.f32 %v854, %v779
  %v883 = vadd.f32 %v859, %v779
  %v884 = vadd.f32 %v862, %v779
  %v885 = vadd.f32 %v867, %v779
  %v886 = vadd.f32 %v870, %v779
  %v887 = vadd.f32 %v875, %v779
  %v888 = vadd.f32 %v878, %v779
  %v889 = vmax.f32 %v881, 0.0
  %v890 = vmax.f32 %v882, 0.0
  %v891 = vmax.f32 %v883, 0.0
  %v892 = vmax.f32 %v884, 0.0
  %v893 = vmax.f32 %v885, 0.0
  %v894 = vmax.f32 %v886, 0.0
  %v895 = vmax.f32 %v887, 0.0
  %v896 = vmax.f32 %v888, 0.0
  %v897 = vld [vmem:[%s5] sm:$0x1]
  %v899 = vlaneseq
  %v900 = vshrl.u32 %v899, 7
  %v901 = vsub.s32 0, %v900
  %v902 = vrot.slane %v897, %v901
  %v904 = vmul.f32 %v889, %v902
  %v905 = vmul.f32 %v890, %v902
  %v906 = vmul.f32 %v891, %v902
  %v907 = vmul.f32 %v892, %v902
  %v908 = vmul.f32 %v893, %v902
  %v909 = vmul.f32 %v894, %v902
  %v910 = vmul.f32 %v895, %v902
  %v911 = vmul.f32 %v896, %v902
  %912 = vadd.xlane.f32.xlu0 %v904
  %v913 = vpop.xlane.xlu0 %912
  %914 = vadd.xlane.f32.xlu0 %v905
  %v915 = vpop.xlane.xlu0 %914
  %916 = vadd.xlane.f32.xlu0 %v906
  %v917 = vpop.xlane.xlu0 %916
  %918 = vadd.xlane.f32.xlu0 %v907
  %v919 = vpop.xlane.xlu0 %918
  %920 = vadd.xlane.f32.xlu0 %v908
  %v921 = vpop.xlane.xlu0 %920
  %922 = vadd.xlane.f32.xlu0 %v909
  %v923 = vpop.xlane.xlu0 %922
  %924 = vadd.xlane.f32.xlu0 %v910
  %v925 = vpop.xlane.xlu0 %924
  %926 = vadd.xlane.f32.xlu0 %v911
  %v927 = vpop.xlane.xlu0 %926
  %v928 = vld [vmem:[#allocation3] sm:$0x1]
  %v930 = vlaneseq
  %v931 = vshrl.u32 %v930, 7
  %v932 = vsub.s32 0, %v931
  %v933 = vrot.slane %v928, %v932
  %v935 = vadd.f32 %v913, %v933
  %v936 = vadd.f32 %v915, %v933
  %v937 = vadd.f32 %v917, %v933
  %v938 = vadd.f32 %v919, %v933
  %v939 = vadd.f32 %v921, %v933
  %v940 = vadd.f32 %v923, %v933
  %v941 = vadd.f32 %v925, %v933
  %v942 = vadd.f32 %v927, %v933
  %vm943 = vcmask 7168
  %v944 = vsel %vm943, %v935, -inf
  %v945 = vsel %vm943, %v936, -inf
  %v946 = vsel %vm943, %v937, -inf
  %v947 = vsel %vm943, %v938, -inf
  %v948 = vsel %vm943, %v939, -inf
  %v949 = vmax.f32 %v944, %v948
  %v950 = vsel %vm943, %v940, -inf
  %v951 = vmax.f32 %v945, %v950
  %v952 = vsel %vm943, %v941, -inf
  %v953 = vmax.f32 %v946, %v952
  %v954 = vsel %vm943, %v942, -inf
  %v955 = vmax.f32 %v947, %v954
  %v956 = vmax.f32 %v949, %v951
  %v957 = vmax.f32 %v953, %v955
  %v958 = vmax.f32 %v956, %v957
  %v959 = vsub.f32 %v935, %v958
  %v960 = vsub.f32 %v936, %v958
  %v961 = vsub.f32 %v937, %v958
  %v962 = vsub.f32 %v938, %v958
  %v963 = vsub.f32 %v939, %v958
  %v964 = vsub.f32 %v940, %v958
  %v965 = vsub.f32 %v941, %v958
  %v966 = vsub.f32 %v942, %v958
  %v967 = vmul.f32 %v959, 1.442695
  %v968 = vpow.pop %v967
  %v969 = vmul.f32 %v960, 1.442695
  %v970 = vpow.pop %v969
  %v971 = vmul.f32 %v961, 1.442695
  %v972 = vpow.pop %v971
  %v973 = vmul.f32 %v962, 1.442695
  %v974 = vpow.pop %v973
  %v975 = vmul.f32 %v963, 1.442695
  %v976 = vpow.pop %v975
  %v977 = vmul.f32 %v964, 1.442695
  %v978 = vpow.pop %v977
  %v979 = vmul.f32 %v965, 1.442695
  %v980 = vpow.pop %v979
  %v981 = vmul.f32 %v966, 1.442695
  %v982 = vpow.pop %v981
  %v983 = vsel %vm943, %v968, 0.0
  %v984 = vsel %vm943, %v970, 0.0
  %v985 = vadd.f32 %v983, %v984
  %v986 = vsel %vm943, %v972, 0.0
  %v987 = vadd.f32 %v985, %v986
  %v988 = vsel %vm943, %v974, 0.0
  %v989 = vadd.f32 %v987, %v988
  %v990 = vsel %vm943, %v976, 0.0
  %v991 = vadd.f32 %v989, %v990
  %v992 = vsel %vm943, %v978, 0.0
  %v993 = vadd.f32 %v991, %v992
  %v994 = vsel %vm943, %v980, 0.0
  %v995 = vadd.f32 %v993, %v994
  %v996 = vsel %vm943, %v982, 0.0
  %v997 = vadd.f32 %v995, %v996
  %v998 = vrcp.pop %v997
  %v999 = vmul.f32 %v968, %v998
  %v1000 = vmul.f32 %v970, %v998
  %v1001 = vmul.f32 %v972, %v998
  %v1002 = vmul.f32 %v974, %v998
  %v1003 = vmul.f32 %v976, %v998
  %v1004 = vmul.f32 %v978, %v998
  %v1005 = vmul.f32 %v980, %v998
  %v1006 = vmul.f32 %v982, %v998
  %1008 = vset.pattern.permute.xlu0 0
  %1009 = vperm.xlu0 %1008, %v999
  %v1010 = vpop.permute.xlu0 %1009
  %1013 = vset.pattern.permute.xlu0 0
  %1014 = vperm.xlu0 %1013, %v1000
  %v1015 = vpop.permute.xlu0 %1014
  %1018 = vset.pattern.permute.xlu0 0
  %1019 = vperm.xlu0 %1018, %v1001
  %v1020 = vpop.permute.xlu0 %1019
  %1023 = vset.pattern.permute.xlu0 0
  %1024 = vperm.xlu0 %1023, %v1002
  %v1025 = vpop.permute.xlu0 %1024
  %1028 = vset.pattern.permute.xlu0 0
  %1029 = vperm.xlu0 %1028, %v1003
  %v1030 = vpop.permute.xlu0 %1029
  %1033 = vset.pattern.permute.xlu0 0
  %1034 = vperm.xlu0 %1033, %v1004
  %v1035 = vpop.permute.xlu0 %1034
  %1038 = vset.pattern.permute.xlu0 0
  %1039 = vperm.xlu0 %1038, %v1005
  %v1040 = vpop.permute.xlu0 %1039
  %1043 = vset.pattern.permute.xlu0 0
  %1044 = vperm.xlu0 %1043, %v1006
  %v1045 = vpop.permute.xlu0 %1044
  %v1047 = vmul.f32 %v709, %v1010
  %v1048 = vmul.f32 %v710, %v1015
  %v1049 = vmul.f32 %v711, %v1020
  %v1050 = vmul.f32 %v712, %v1025
  %v1051 = vmul.f32 %v713, %v1030
  %v1052 = vmul.f32 %v714, %v1035
  %v1053 = vmul.f32 %v715, %v1040
  %v1054 = vmul.f32 %v716, %v1045
  %v1055 = vsel %vm58, %v1047, 0.0
  %v1056 = vsel %vm58, %v1048, 0.0
  %v1057 = vadd.f32 %v1055, %v1056
  %v1058 = vsel %vm58, %v1049, 0.0
  %v1059 = vadd.f32 %v1057, %v1058
  %v1060 = vsel %vm58, %v1050, 0.0
  %v1061 = vadd.f32 %v1059, %v1060
  %v1062 = vsel %vm58, %v1051, 0.0
  %v1063 = vadd.f32 %v1061, %v1062
  %v1064 = vsel %vm58, %v1052, 0.0
  %v1065 = vadd.f32 %v1063, %v1064
  %v1066 = vsel %vm58, %v1053, 0.0
  %v1067 = vadd.f32 %v1065, %v1066
  %v1068 = vsel %vm58, %v1054, 0.0
  %v1069 = vadd.f32 %v1067, %v1068
  %v1070 = vpack.c.bf16 %v1069, %v1069
  %v1071 = vld [vmem:[%s7] sm:$0xf]
  %v1072 = vld [vmem:[%s7 + $0x4] sm:$0xf]
  %v1073 = vld [vmem:[%s7 + $0x8] sm:$0xf]
  %v1074 = vld [vmem:[%s7 + $0xc] sm:$0xf]
  %v1075 = vld [vmem:[%s8] sm:$0x1]
  %v1077 = vlaneseq
  %v1078 = vshrl.u32 %v1077, 7
  %v1079 = vsub.s32 0, %v1078
  %v1080 = vrot.slane %v1075, %v1079
  %v1086 = vunpack.c.l.b16 %v1071
  %v1087 = vunpack.c.l.b16 %v1072
  %v1088 = vunpack.c.l.b16 %v1073
  %v1089 = vunpack.c.l.b16 %v1074
  %v1090 = vpack.c.b16 %v1087, %v1086
  %v1091 = vpack.c.b16 %v1089, %v1088
  %v1095 = vsel %vm58, %v1070, 0
  %1097 = vmatprep.subr.bf16.mxu0 0
  %1098 = vmatpush1.bf16.msra.mxu0 %v1090
  %1099 = vmatprep.subr.bf16.mxu0 0
  %1100 = vmatpush1.bf16.msra.mxu0 %v1091
  %1101 = vmatprep.subr.bf16.mxu0 0
  %1102 = vmatpush1.bf16.msra.mxu0 0
  %1103 = vmatprep.subr.bf16.mxu0 0
  %1104 = vmatpush1.bf16.msra.mxu0 0
  %1105 = vmatprep.subr.bf16.mxu0 0
  %1106 = vmatpush1.bf16.msra.mxu0 0
  %1107 = vmatprep.subr.bf16.mxu0 0
  %1108 = vmatpush1.bf16.msra.mxu0 0
  %1109 = vmatprep.subr.bf16.mxu0 0
  %1110 = vmatpush1.bf16.msra.mxu0 0
  %1111 = vmatprep.subr.bf16.mxu0 0
  %1112 = vmatpush1.bf16.msra.mxu0 0
  %1113 = vmatprep.subr.bf16.mxu0 0
  %1114 = vmatpush1.bf16.msra.mxu0 0
  %1115 = vmatprep.subr.bf16.mxu0 0
  %1116 = vmatpush1.bf16.msra.mxu0 0
  %1117 = vmatprep.subr.bf16.mxu0 0
  %1118 = vmatpush1.bf16.msra.mxu0 0
  %1119 = vmatprep.subr.bf16.mxu0 0
  %1120 = vmatpush1.bf16.msra.mxu0 0
  %1121 = vmatprep.subr.bf16.mxu0 0
  %1122 = vmatpush1.bf16.msra.mxu0 0
  %1123 = vmatprep.subr.bf16.mxu0 0
  %1124 = vmatpush1.bf16.msra.mxu0 0
  %1125 = vmatprep.subr.bf16.mxu0 0
  %1126 = vmatpush1.bf16.msra.mxu0 0
  %1127 = vmatprep.subr.bf16.mxu0 0
  %1128 = vmatpush1.bf16.msra.mxu0 0
  %1129 = vmatprep.mubr.bf16.mxu0 0
  %1130 = vmatmul.mubr.bf16.gmra.mrb[0].mxu0 %v1095
  %v1131 = vpop.f32.mrb[0].mxu0
  %v1132 = vadd.f32 %v1080, %v1131
  %v1133 = vpop.f32.mrb[0].mxu0
  %v1134 = vpop.f32.mrb[0].mxu0
  %v1135 = vpop.f32.mrb[0].mxu0
  %1136 = vdwg.mxu0
  %v1137 = vmax.f32 %v1132, 0.0
  %v1138 = vpack.c.bf16 %v1137, %v1137
  %v1139 = vld [vmem:[%s9] sm:$0xf]
  %v1140 = vld [vmem:[%s9 + $0x4] sm:$0xf]
  %v1141 = vld [vmem:[%s9 + $0x8] sm:$0xf]
  %v1142 = vld [vmem:[%s9 + $0xc] sm:$0xf]
  %v1143 = vld [vmem:[%s10] sm:$0x1]
  %v1145 = vlaneseq
  %v1146 = vshrl.u32 %v1145, 7
  %v1147 = vsub.s32 0, %v1146
  %v1148 = vrot.slane %v1143, %v1147
  %v1154 = vunpack.c.l.b16 %v1139
  %v1155 = vunpack.c.l.b16 %v1140
  %v1156 = vunpack.c.l.b16 %v1141
  %v1157 = vunpack.c.l.b16 %v1142
  %v1158 = vpack.c.b16 %v1155, %v1154
  %v1159 = vpack.c.b16 %v1157, %v1156
  %v1163 = vsel %vm58, %v1138, 0
  %1165 = vmatprep.subr.bf16.mxu0 0
  %1166 = vmatpush1.bf16.msra.mxu0 %v1158
  %1167 = vmatprep.subr.bf16.mxu0 0
  %1168 = vmatpush1.bf16.msra.mxu0 %v1159
  %1169 = vmatprep.subr.bf16.mxu0 0
  %1170 = vmatpush1.bf16.msra.mxu0 0
  %1171 = vmatprep.subr.bf16.mxu0 0
  %1172 = vmatpush1.bf16.msra.mxu0 0
  %1173 = vmatprep.subr.bf16.mxu0 0
  %1174 = vmatpush1.bf16.msra.mxu0 0
  %1175 = vmatprep.subr.bf16.mxu0 0
  %1176 = vmatpush1.bf16.msra.mxu0 0
  %1177 = vmatprep.subr.bf16.mxu0 0
  %1178 = vmatpush1.bf16.msra.mxu0 0
  %1179 = vmatprep.subr.bf16.mxu0 0
  %1180 = vmatpush1.bf16.msra.mxu0 0
  %1181 = vmatprep.subr.bf16.mxu0 0
  %1182 = vmatpush1.bf16.msra.mxu0 0
  %1183 = vmatprep.subr.bf16.mxu0 0
  %1184 = vmatpush1.bf16.msra.mxu0 0
  %1185 = vmatprep.subr.bf16.mxu0 0
  %1186 = vmatpush1.bf16.msra.mxu0 0
  %1187 = vmatprep.subr.bf16.mxu0 0
  %1188 = vmatpush1.bf16.msra.mxu0 0
  %1189 = vmatprep.subr.bf16.mxu0 0
  %1190 = vmatpush1.bf16.msra.mxu0 0
  %1191 = vmatprep.subr.bf16.mxu0 0
  %1192 = vmatpush1.bf16.msra.mxu0 0
  %1193 = vmatprep.subr.bf16.mxu0 0
  %1194 = vmatpush1.bf16.msra.mxu0 0
  %1195 = vmatprep.subr.bf16.mxu0 0
  %1196 = vmatpush1.bf16.msra.mxu0 0
  %1197 = vmatprep.mubr.bf16.mxu0 0
  %1198 = vmatmul.mubr.bf16.gmra.mrb[0].mxu0 %v1163
  %v1199 = vpop.f32.mrb[0].mxu0
  %v1200 = vadd.f32 %v1148, %v1199
  %v1201 = vpop.f32.mrb[0].mxu0
  %v1202 = vpop.f32.mrb[0].mxu0
  %v1203 = vpop.f32.mrb[0].mxu0
  %1204 = vdwg.mxu0
  %vm1205 = vcmask 15360
  %1206 = vst.msk [vmem:[%s11] sm:$0xff] %vm1205, %v1200
  // Predicated region
  $region46: #{_lambda_.3} parent=0 // pred_check
    _
  $region47: #{_lambda_.3} parent=0 // pred_check_branch
    %1208 = sbr.rel (0) target = $region49
  $region48: #{_lambda_.3} parent=0 // pred_region
    _
  $region49: #{_lambda_.3} parent=0 // pred_fallthru
    _
  // Predicated region
  $region50: #{_lambda_.3} parent=0 // pred_check
    _
  $region51: #{_lambda_.3} parent=0 // pred_check_branch
    %1210 = sbr.rel (0) target = $region53
  $region52: #{_lambda_.3} parent=0 // pred_region
    _
  $region53: #{_lambda_.3} parent=0 // pred_fallthru
    _

</llo_original>
